<compile_context>
chip_gen: v7x
topology: tpu7x:2x2x1
jax: 0.10.0
libtpu: 0.0.40
codegen_flags: <defaults>
</compile_context>

<pallas_src>
import jax
import jax.numpy as jnp
from jax.experimental import pallas as pl
from jax.experimental.pallas import tpu as pltpu

# ---- static configuration: ResidualBlock(in_planes=4, out_planes=4, stride=1, downsample=None)
N, CIN, H, W = 2, 4, 16, 16
COUT = 4
assert CIN == COUT                  # residual add requires it when downsample is None
HP, WP = H + 2, W + 2               # spatially zero-padded image
LP = N * HP * WP                    # padded-flatten length on the lane axis: 2*18*18 = 648
NHW = N * H * W                     # valid (interior) pixel count: 512
MARGIN = 32                         # lane margin so all 9 shifted reads stay in bounds (>= WP+1)
P_DROP = 0.2                        # F.dropout(p=0.2)
NEG_SLOPE = 0.01                    # F.leaky_relu default negative_slope
EPS = 1e-5                          # nn.BatchNorm2d default eps
TAPS = tuple((ky - 1, kx - 1) for ky in range(3) for kx in range(3))   # tap t = ky*3 + kx


def _leaky_relu(x):
    return jnp.where(x >= 0, x, NEG_SLOPE * x)


def _residual_block_kernel(x_pad_ref, w1_ref, w2_ref, g1_ref, b1_ref,
                           g2_ref, b2_ref, keep_ref, mask_ref, o_ref,
                           col_ref, mid_ref):
    mask = mask_ref[...]                         # (1, LP) interior mask; broadcasts over channels
    inv_n = 1.0 / NHW

    def conv3x3(src_ref, w_ref):
        # Stage the 9 spatially shifted (C, LP) windows as rows of the im2col slab.
        # True zero padding: halo columns of src already hold real zeros, so no masking needed.
        for t, (dy, dx) in enumerate(TAPS):
            off = MARGIN + dy * WP + dx          # static lane offset
            col_ref[t * CIN:(t + 1) * CIN, :] = src_ref[:, off:off + LP]
        # Single MXU matmul per conv: (COUT, 9*C) @ (9*C, LP) -> (COUT, LP), f32 accumulation.
        cols = col_ref[...].astype(jnp.bfloat16)
        return jnp.dot(w_ref[...], cols, preferred_element_type=jnp.float32)

    def batch_norm(y, g_ref, b_ref):
        # Training-mode BatchNorm2d: per-channel batch stats over the NHW interior,
        # single pass via E[y] and E[y^2] (biased variance, matching PyTorch).
        ym = y * mask                            # zero out halo/garbage positions
        s1 = jnp.sum(ym, axis=1, keepdims=True)  # (COUT, 1) lane reduce
        s2 = jnp.sum(ym * ym, axis=1, keepdims=True)
        mean = s1 * inv_n
        var = s2 * inv_n - mean * mean
        return (y - mean) * jax.lax.rsqrt(var + EPS) * g_ref[...] + b_ref[...]

    identity = x_pad_ref[:, MARGIN:MARGIN + LP]              # (CIN, LP); zeros on the halo

    out = conv3x3(x_pad_ref, w1_ref)                         # conv1
    out = _leaky_relu(batch_norm(out, g1_ref, b1_ref))       # bn1 + leaky_relu
    # F.dropout(p=0.2, training=True): precomputed Bernoulli keep-mask scaled by 1/(1-p).
    # The keep-mask is zero on the halo, which also restores exact zero padding for conv2.
    out = out * (keep_ref[...] * (1.0 / (1.0 - P_DROP)))

    # Stage the intermediate in its own margin-padded buffer; only the margins need zeroing.
    mid_ref[:, 0:MARGIN] = jnp.zeros((COUT, MARGIN), jnp.float32)
    mid_ref[:, MARGIN + LP:MARGIN + LP + MARGIN] = jnp.zeros((COUT, MARGIN), jnp.float32)
    mid_ref[:, MARGIN:MARGIN + LP] = out

    out = conv3x3(mid_ref, w2_ref)                           # conv2
    out = batch_norm(out, g2_ref, b2_ref)                    # bn2

    # TODO(synk): self.downsample is None for this config (stride=1, in_planes==out_planes);
    # a non-trivial downsample branch is not implemented.
    o_ref[...] = _leaky_relu(out + identity)


def _to_padded_rows(a_nchw):
    # NCHW -> (C, N*(H+2)*(W+2)): channels on sublanes, zero-padded spatial flatten on lanes.
    a = jnp.transpose(a_nchw, (1, 0, 2, 3))
    a = jnp.pad(a, ((0, 0), (0, 0), (1, 1), (1, 1)))
    return a.reshape(a.shape[0], LP)


def _weight_slab(w_oihw):
    # PyTorch OIHW (Co, Ci, 3, 3) -> (Co, 9*Ci) with column index t*Ci + ci, t = ky*3 + kx.
    co, ci = w_oihw.shape[0], w_oihw.shape[1]
    return (w_oihw.reshape(co, ci, 9).transpose(0, 2, 1)
            .reshape(co, 9 * ci).astype(jnp.bfloat16))


@jax.jit
def residual_block(x_nchw, w1_oihw, w2_oihw, g1, b1, g2, b2, keep_nchw):
    n, c, h, w = x_nchw.shape
    assert (n, c, h, w) == (N, CIN, H, W)

    x_rows = _to_padded_rows(x_nchw.astype(jnp.float32))             # (CIN, LP)
    x_pad = jnp.pad(x_rows, ((0, 0), (MARGIN, MARGIN)))              # (CIN, LP + 2*MARGIN)
    keep_rows = _to_padded_rows(keep_nchw.astype(jnp.float32))       # (COUT, LP), 0 on halo
    mask = _to_padded_rows(jnp.ones((N, 1, H, W), jnp.float32))      # (1, LP) interior mask

    w1 = _weight_slab(w1_oihw)                                       # (COUT, 9*CIN) bf16
    w2 = _weight_slab(w2_oihw)                                       # (COUT, 9*COUT) bf16

    vmem = pl.BlockSpec(memory_space=pltpu.MemorySpace.VMEM)
    out_rows = pl.pallas_call(
        _residual_block_kernel,
        out_shape=jax.ShapeDtypeStruct((COUT, LP), jnp.float32),
        in_specs=[vmem] * 9,
        out_specs=vmem,
        scratch_shapes=[pltpu.VMEM((9 * CIN, LP), jnp.float32),          # im2col slab
                        pltpu.VMEM((COUT, LP + 2 * MARGIN), jnp.float32)],  # mid buffer
    )(x_pad, w1, w2,
      g1.reshape(COUT, 1), b1.reshape(COUT, 1),
      g2.reshape(COUT, 1), b2.reshape(COUT, 1),
      keep_rows, mask)

    out = out_rows.reshape(COUT, N, HP, WP)[:, :, 1:1 + H, 1:1 + W]
    return jnp.transpose(out, (1, 0, 2, 3))                          # back to NCHW


# ---- pure-JAX reference (same math) for a sanity check ----
def _reference(x, w1, w2, g1, b1, g2, b2, keep):
    def conv(a, wt):
        return jax.lax.conv_general_dilated(
            a, wt, (1, 1), ((1, 1), (1, 1)),
            dimension_numbers=('NCHW', 'OIHW', 'NCHW'),
            precision=jax.lax.Precision.HIGHEST)

    def bn(y, g, b):
        mean = jnp.mean(y, axis=(0, 2, 3), keepdims=True)
        var = jnp.mean(jnp.square(y - mean), axis=(0, 2, 3), keepdims=True)
        return ((y - mean) * jax.lax.rsqrt(var + EPS) * g.reshape(1, -1, 1, 1)
                + b.reshape(1, -1, 1, 1))

    lrelu = lambda y: jnp.where(y >= 0, y, NEG_SLOPE * y)
    out = lrelu(bn(conv(x, w1), g1, b1))
    out = out * keep * (1.0 / (1.0 - P_DROP))
    out = bn(conv(out, w2), g2, b2)
    return lrelu(out + x)


if __name__ == "__main__":
    key = jax.random.PRNGKey(0)
    kx, kw1, kw2, kd = jax.random.split(key, 4)

    x = jax.random.normal(kx, (N, CIN, H, W), jnp.float32)

    # nn.init.xavier_uniform_ for 3x3 convs: bound = sqrt(6 / (fan_in + fan_out)).
    fan_in, fan_out = CIN * 9, COUT * 9
    bound = (6.0 / (fan_in + fan_out)) ** 0.5
    w1 = jax.random.uniform(kw1, (COUT, CIN, 3, 3), jnp.float32, -bound, bound)
    w2 = jax.random.uniform(kw2, (COUT, COUT, 3, 3), jnp.float32, -bound, bound)

    # BatchNorm affine params per module init: weight=1, bias=0.
    g1 = jnp.ones((COUT,), jnp.float32); b1 = jnp.zeros((COUT,), jnp.float32)
    g2 = jnp.ones((COUT,), jnp.float32); b2 = jnp.zeros((COUT,), jnp.float32)

    # Deterministic dropout keep-mask (F.dropout is stochastic; we fix the randomness here).
    keep = jax.random.bernoulli(kd, 1.0 - P_DROP, (N, COUT, H, W)).astype(jnp.float32)

    out = jax.block_until_ready(residual_block(x, w1, w2, g1, b1, g2, b2, keep))
    ref = _reference(x, w1, w2, g1, b1, g2, b2, keep)

    assert out.shape == (N, COUT, H, W)
    assert bool(jnp.allclose(out, ref, atol=2e-2, rtol=2e-2)), \
        float(jnp.max(jnp.abs(out - ref)))
    print("KERNEL_OK")
</pallas_src>

<mosaic_0001>
module attributes {stable_mosaic.version = 11 : i64} {
  func.func @_residual_block_kernel(%arg0: memref<4x712xf32, #tpu.memory_space<vmem>>, %arg1: memref<4x36xbf16, #tpu.memory_space<vmem>>, %arg2: memref<4x36xbf16, #tpu.memory_space<vmem>>, %arg3: memref<4x1xf32, #tpu.memory_space<vmem>>, %arg4: memref<4x1xf32, #tpu.memory_space<vmem>>, %arg5: memref<4x1xf32, #tpu.memory_space<vmem>>, %arg6: memref<4x1xf32, #tpu.memory_space<vmem>>, %arg7: memref<4x648xf32, #tpu.memory_space<vmem>>, %arg8: memref<1x648xf32, #tpu.memory_space<vmem>>, %arg9: memref<4x648xf32, #tpu.memory_space<vmem>>, %arg10: memref<36x648xf32, #tpu.memory_space<vmem>>, %arg11: memref<4x712xf32, #tpu.memory_space<vmem>>) attributes {dimension_semantics = [], scalar_prefetch = 0 : i64, scratch_operands = 2 : i64, tpu.core_type = #tpu.core_type<tc>} {
    %c0 = arith.constant 0 : index
    %c0_0 = arith.constant 0 : index
    %0 = vector.load %arg8[%c0, %c0_0] : memref<1x648xf32, #tpu.memory_space<vmem>>, vector<1x648xf32>
    %c0_1 = arith.constant 0 : index
    %c32 = arith.constant 32 : index
    %1 = vector.load %arg0[%c0_1, %c32] : memref<4x712xf32, #tpu.memory_space<vmem>>, vector<4x648xf32>
    %c0_2 = arith.constant 0 : index
    %c13 = arith.constant 13 : index
    %2 = vector.load %arg0[%c0_2, %c13] : memref<4x712xf32, #tpu.memory_space<vmem>>, vector<4x648xf32>
    %c0_3 = arith.constant 0 : index
    %c0_4 = arith.constant 0 : index
    %3 = vector.load %arg10[%c0_3, %c0_4] : memref<36x648xf32, #tpu.memory_space<vmem>>, vector<4x648xf32>
    tpu.vector_store %arg10[%c0_3, %c0_4], %2 {strides = array<i32>} : memref<36x648xf32, #tpu.memory_space<vmem>>, vector<4x648xf32>,
    %c0_5 = arith.constant 0 : index
    %c14 = arith.constant 14 : index
    %4 = vector.load %arg0[%c0_5, %c14] : memref<4x712xf32, #tpu.memory_space<vmem>>, vector<4x648xf32>
    %c4 = arith.constant 4 : index
    %c0_6 = arith.constant 0 : index
    %5 = vector.load %arg10[%c4, %c0_6] : memref<36x648xf32, #tpu.memory_space<vmem>>, vector<4x648xf32>
    tpu.vector_store %arg10[%c4, %c0_6], %4 {strides = array<i32>} : memref<36x648xf32, #tpu.memory_space<vmem>>, vector<4x648xf32>,
    %c0_7 = arith.constant 0 : index
    %c15 = arith.constant 15 : index
    %6 = vector.load %arg0[%c0_7, %c15] : memref<4x712xf32, #tpu.memory_space<vmem>>, vector<4x648xf32>
    %c8 = arith.constant 8 : index
    %c0_8 = arith.constant 0 : index
    %7 = vector.load %arg10[%c8, %c0_8] : memref<36x648xf32, #tpu.memory_space<vmem>>, vector<4x648xf32>
    tpu.vector_store %arg10[%c8, %c0_8], %6 {strides = array<i32>} : memref<36x648xf32, #tpu.memory_space<vmem>>, vector<4x648xf32>,
    %c0_9 = arith.constant 0 : index
    %c31 = arith.constant 31 : index
    %8 = vector.load %arg0[%c0_9, %c31] : memref<4x712xf32, #tpu.memory_space<vmem>>, vector<4x648xf32>
    %c12 = arith.constant 12 : index
    %c0_10 = arith.constant 0 : index
    %9 = vector.load %arg10[%c12, %c0_10] : memref<36x648xf32, #tpu.memory_space<vmem>>, vector<4x648xf32>
    tpu.vector_store %arg10[%c12, %c0_10], %8 {strides = array<i32>} : memref<36x648xf32, #tpu.memory_space<vmem>>, vector<4x648xf32>,
    %c0_11 = arith.constant 0 : index
    %c32_12 = arith.constant 32 : index
    %10 = vector.load %arg0[%c0_11, %c32_12] : memref<4x712xf32, #tpu.memory_space<vmem>>, vector<4x648xf32>
    %c16 = arith.constant 16 : index
    %c0_13 = arith.constant 0 : index
    %11 = vector.load %arg10[%c16, %c0_13] : memref<36x648xf32, #tpu.memory_space<vmem>>, vector<4x648xf32>
    tpu.vector_store %arg10[%c16, %c0_13], %10 {strides = array<i32>} : memref<36x648xf32, #tpu.memory_space<vmem>>, vector<4x648xf32>,
    %c0_14 = arith.constant 0 : index
    %c33 = arith.constant 33 : index
    %12 = vector.load %arg0[%c0_14, %c33] : memref<4x712xf32, #tpu.memory_space<vmem>>, vector<4x648xf32>
    %c20 = arith.constant 20 : index
    %c0_15 = arith.constant 0 : index
    %13 = vector.load %arg10[%c20, %c0_15] : memref<36x648xf32, #tpu.memory_space<vmem>>, vector<4x648xf32>
    tpu.vector_store %arg10[%c20, %c0_15], %12 {strides = array<i32>} : memref<36x648xf32, #tpu.memory_space<vmem>>, vector<4x648xf32>,
    %c0_16 = arith.constant 0 : index
    %c49 = arith.constant 49 : index
    %14 = vector.load %arg0[%c0_16, %c49] : memref<4x712xf32, #tpu.memory_space<vmem>>, vector<4x648xf32>
    %c24 = arith.constant 24 : index
    %c0_17 = arith.constant 0 : index
    %15 = vector.load %arg10[%c24, %c0_17] : memref<36x648xf32, #tpu.memory_space<vmem>>, vector<4x648xf32>
    tpu.vector_store %arg10[%c24, %c0_17], %14 {strides = array<i32>} : memref<36x648xf32, #tpu.memory_space<vmem>>, vector<4x648xf32>,
    %c0_18 = arith.constant 0 : index
    %c50 = arith.constant 50 : index
    %16 = vector.load %arg0[%c0_18, %c50] : memref<4x712xf32, #tpu.memory_space<vmem>>, vector<4x648xf32>
    %c28 = arith.constant 28 : index
    %c0_19 = arith.constant 0 : index
    %17 = vector.load %arg10[%c28, %c0_19] : memref<36x648xf32, #tpu.memory_space<vmem>>, vector<4x648xf32>
    tpu.vector_store %arg10[%c28, %c0_19], %16 {strides = array<i32>} : memref<36x648xf32, #tpu.memory_space<vmem>>, vector<4x648xf32>,
    %c0_20 = arith.constant 0 : index
    %c51 = arith.constant 51 : index
    %18 = vector.load %arg0[%c0_20, %c51] : memref<4x712xf32, #tpu.memory_space<vmem>>, vector<4x648xf32>
    %c32_21 = arith.constant 32 : index
    %c0_22 = arith.constant 0 : index
    %19 = vector.load %arg10[%c32_21, %c0_22] : memref<36x648xf32, #tpu.memory_space<vmem>>, vector<4x648xf32>
    tpu.vector_store %arg10[%c32_21, %c0_22], %18 {strides = array<i32>} : memref<36x648xf32, #tpu.memory_space<vmem>>, vector<4x648xf32>,
    %c0_23 = arith.constant 0 : index
    %c0_24 = arith.constant 0 : index
    %20 = vector.load %arg10[%c0_23, %c0_24] : memref<36x648xf32, #tpu.memory_space<vmem>>, vector<36x648xf32>
    %21 = arith.truncf %20 : vector<36x648xf32> to vector<36x648xbf16>
    %c0_25 = arith.constant 0 : index
    %c0_26 = arith.constant 0 : index
    %22 = vector.load %arg1[%c0_25, %c0_26] : memref<4x36xbf16, #tpu.memory_space<vmem>>, vector<4x36xbf16>
    %cst = arith.constant dense<0.000000e+00> : vector<4x648xf32>
    %23 = tpu.matmul %22, %21, %cst {dimension_numbers = #tpu.dot_dimension_numbers<[1], [0], [0], [1], [0, 0, 1, 1], [], []>} : vector<4x36xbf16>, vector<36x648xbf16>, vector<4x648xf32> -> vector<4x648xf32>
    %24 = vector.broadcast %0 : vector<1x648xf32> to vector<4x648xf32>
    %25 = arith.mulf %23, %24 : vector<4x648xf32>
    %cst_27 = arith.constant dense<0.000000e+00> : vector<4xf32>
    %26 = vector.multi_reduction <add>, %25, %cst_27 [1] : vector<4x648xf32> to vector<4xf32>
    %27 = vector.shape_cast %26 : vector<4xf32> to vector<4x1xf32>
    %28 = arith.mulf %25, %25 : vector<4x648xf32>
    %cst_28 = arith.constant dense<0.000000e+00> : vector<4xf32>
    %29 = vector.multi_reduction <add>, %28, %cst_28 [1] : vector<4x648xf32> to vector<4xf32>
    %30 = vector.shape_cast %29 : vector<4xf32> to vector<4x1xf32>
    %cst_29 = arith.constant 0.001953125 : f32
    %31 = vector.broadcast %cst_29 : f32 to vector<4x1xf32>
    %32 = arith.mulf %27, %31 : vector<4x1xf32>
    %cst_30 = arith.constant 0.001953125 : f32
    %33 = vector.broadcast %cst_30 : f32 to vector<4x1xf32>
    %34 = arith.mulf %30, %33 : vector<4x1xf32>
    %35 = arith.mulf %32, %32 : vector<4x1xf32>
    %36 = arith.subf %34, %35 : vector<4x1xf32>
    %37 = vector.broadcast %32 : vector<4x1xf32> to vector<4x648xf32>
    %38 = arith.subf %23, %37 : vector<4x648xf32>
    %cst_31 = arith.constant 9.99999974E-6 : f32
    %39 = vector.broadcast %cst_31 : f32 to vector<4x1xf32>
    %40 = arith.addf %36, %39 : vector<4x1xf32>
    %41 = math.rsqrt %40 : vector<4x1xf32>
    %42 = vector.broadcast %41 : vector<4x1xf32> to vector<4x648xf32>
    %43 = arith.mulf %38, %42 : vector<4x648xf32>
    %c0_32 = arith.constant 0 : index
    %c0_33 = arith.constant 0 : index
    %44 = vector.load %arg3[%c0_32, %c0_33] : memref<4x1xf32, #tpu.memory_space<vmem>>, vector<4x1xf32>
    %45 = vector.broadcast %44 : vector<4x1xf32> to vector<4x648xf32>
    %46 = arith.mulf %43, %45 : vector<4x648xf32>
    %c0_34 = arith.constant 0 : index
    %c0_35 = arith.constant 0 : index
    %47 = vector.load %arg4[%c0_34, %c0_35] : memref<4x1xf32, #tpu.memory_space<vmem>>, vector<4x1xf32>
    %48 = vector.broadcast %47 : vector<4x1xf32> to vector<4x648xf32>
    %49 = arith.addf %46, %48 : vector<4x648xf32>
    %cst_36 = arith.constant 0.000000e+00 : f32
    %50 = vector.broadcast %cst_36 : f32 to vector<4x648xf32>
    %51 = arith.cmpf oge, %49, %50 : vector<4x648xf32>
    %cst_37 = arith.constant 0.00999999977 : f32
    %52 = vector.broadcast %cst_37 : f32 to vector<4x648xf32>
    %53 = arith.mulf %52, %49 : vector<4x648xf32>
    %54 = arith.select %51, %49, %53 : vector<4x648xi1>, vector<4x648xf32>
    %c0_38 = arith.constant 0 : index
    %c0_39 = arith.constant 0 : index
    %55 = vector.load %arg7[%c0_38, %c0_39] : memref<4x648xf32, #tpu.memory_space<vmem>>, vector<4x648xf32>
    %cst_40 = arith.constant 1.250000e+00 : f32
    %56 = vector.broadcast %cst_40 : f32 to vector<4x648xf32>
    %57 = arith.mulf %55, %56 : vector<4x648xf32>
    %58 = arith.mulf %54, %57 : vector<4x648xf32>
    %cst_41 = arith.constant 0.000000e+00 : f32
    %59 = vector.broadcast %cst_41 : f32 to vector<4x32xf32>
    %c0_42 = arith.constant 0 : index
    %c0_43 = arith.constant 0 : index
    %60 = vector.load %arg11[%c0_42, %c0_43] : memref<4x712xf32, #tpu.memory_space<vmem>>, vector<4x32xf32>
    tpu.vector_store %arg11[%c0_42, %c0_43], %59 {strides = array<i32>} : memref<4x712xf32, #tpu.memory_space<vmem>>, vector<4x32xf32>,
    %cst_44 = arith.constant 0.000000e+00 : f32
    %61 = vector.broadcast %cst_44 : f32 to vector<4x32xf32>
    %c0_45 = arith.constant 0 : index
    %c680 = arith.constant 680 : index
    %62 = vector.load %arg11[%c0_45, %c680] : memref<4x712xf32, #tpu.memory_space<vmem>>, vector<4x32xf32>
    tpu.vector_store %arg11[%c0_45, %c680], %61 {strides = array<i32>} : memref<4x712xf32, #tpu.memory_space<vmem>>, vector<4x32xf32>,
    %c0_46 = arith.constant 0 : index
    %c32_47 = arith.constant 32 : index
    %63 = vector.load %arg11[%c0_46, %c32_47] : memref<4x712xf32, #tpu.memory_space<vmem>>, vector<4x648xf32>
    tpu.vector_store %arg11[%c0_46, %c32_47], %58 {strides = array<i32>} : memref<4x712xf32, #tpu.memory_space<vmem>>, vector<4x648xf32>,
    %c0_48 = arith.constant 0 : index
    %c13_49 = arith.constant 13 : index
    %64 = vector.load %arg11[%c0_48, %c13_49] : memref<4x712xf32, #tpu.memory_space<vmem>>, vector<4x648xf32>
    %c0_50 = arith.constant 0 : index
    %c0_51 = arith.constant 0 : index
    %65 = vector.load %arg10[%c0_50, %c0_51] : memref<36x648xf32, #tpu.memory_space<vmem>>, vector<4x648xf32>
    tpu.vector_store %arg10[%c0_50, %c0_51], %64 {strides = array<i32>} : memref<36x648xf32, #tpu.memory_space<vmem>>, vector<4x648xf32>,
    %c0_52 = arith.constant 0 : index
    %c14_53 = arith.constant 14 : index
    %66 = vector.load %arg11[%c0_52, %c14_53] : memref<4x712xf32, #tpu.memory_space<vmem>>, vector<4x648xf32>
    %c4_54 = arith.constant 4 : index
    %c0_55 = arith.constant 0 : index
    %67 = vector.load %arg10[%c4_54, %c0_55] : memref<36x648xf32, #tpu.memory_space<vmem>>, vector<4x648xf32>
    tpu.vector_store %arg10[%c4_54, %c0_55], %66 {strides = array<i32>} : memref<36x648xf32, #tpu.memory_space<vmem>>, vector<4x648xf32>,
    %c0_56 = arith.constant 0 : index
    %c15_57 = arith.constant 15 : index
    %68 = vector.load %arg11[%c0_56, %c15_57] : memref<4x712xf32, #tpu.memory_space<vmem>>, vector<4x648xf32>
    %c8_58 = arith.constant 8 : index
    %c0_59 = arith.constant 0 : index
    %69 = vector.load %arg10[%c8_58, %c0_59] : memref<36x648xf32, #tpu.memory_space<vmem>>, vector<4x648xf32>
    tpu.vector_store %arg10[%c8_58, %c0_59], %68 {strides = array<i32>} : memref<36x648xf32, #tpu.memory_space<vmem>>, vector<4x648xf32>,
    %c0_60 = arith.constant 0 : index
    %c31_61 = arith.constant 31 : index
    %70 = vector.load %arg11[%c0_60, %c31_61] : memref<4x712xf32, #tpu.memory_space<vmem>>, vector<4x648xf32>
    %c12_62 = arith.constant 12 : index
    %c0_63 = arith.constant 0 : index
    %71 = vector.load %arg10[%c12_62, %c0_63] : memref<36x648xf32, #tpu.memory_space<vmem>>, vector<4x648xf32>
    tpu.vector_store %arg10[%c12_62, %c0_63], %70 {strides = array<i32>} : memref<36x648xf32, #tpu.memory_space<vmem>>, vector<4x648xf32>,
    %c0_64 = arith.constant 0 : index
    %c32_65 = arith.constant 32 : index
    %72 = vector.load %arg11[%c0_64, %c32_65] : memref<4x712xf32, #tpu.memory_space<vmem>>, vector<4x648xf32>
    %c16_66 = arith.constant 16 : index
    %c0_67 = arith.constant 0 : index
    %73 = vector.load %arg10[%c16_66, %c0_67] : memref<36x648xf32, #tpu.memory_space<vmem>>, vector<4x648xf32>
    tpu.vector_store %arg10[%c16_66, %c0_67], %72 {strides = array<i32>} : memref<36x648xf32, #tpu.memory_space<vmem>>, vector<4x648xf32>,
    %c0_68 = arith.constant 0 : index
    %c33_69 = arith.constant 33 : index
    %74 = vector.load %arg11[%c0_68, %c33_69] : memref<4x712xf32, #tpu.memory_space<vmem>>, vector<4x648xf32>
    %c20_70 = arith.constant 20 : index
    %c0_71 = arith.constant 0 : index
    %75 = vector.load %arg10[%c20_70, %c0_71] : memref<36x648xf32, #tpu.memory_space<vmem>>, vector<4x648xf32>
    tpu.vector_store %arg10[%c20_70, %c0_71], %74 {strides = array<i32>} : memref<36x648xf32, #tpu.memory_space<vmem>>, vector<4x648xf32>,
    %c0_72 = arith.constant 0 : index
    %c49_73 = arith.constant 49 : index
    %76 = vector.load %arg11[%c0_72, %c49_73] : memref<4x712xf32, #tpu.memory_space<vmem>>, vector<4x648xf32>
    %c24_74 = arith.constant 24 : index
    %c0_75 = arith.constant 0 : index
    %77 = vector.load %arg10[%c24_74, %c0_75] : memref<36x648xf32, #tpu.memory_space<vmem>>, vector<4x648xf32>
    tpu.vector_store %arg10[%c24_74, %c0_75], %76 {strides = array<i32>} : memref<36x648xf32, #tpu.memory_space<vmem>>, vector<4x648xf32>,
    %c0_76 = arith.constant 0 : index
    %c50_77 = arith.constant 50 : index
    %78 = vector.load %arg11[%c0_76, %c50_77] : memref<4x712xf32, #tpu.memory_space<vmem>>, vector<4x648xf32>
    %c28_78 = arith.constant 28 : index
    %c0_79 = arith.constant 0 : index
    %79 = vector.load %arg10[%c28_78, %c0_79] : memref<36x648xf32, #tpu.memory_space<vmem>>, vector<4x648xf32>
    tpu.vector_store %arg10[%c28_78, %c0_79], %78 {strides = array<i32>} : memref<36x648xf32, #tpu.memory_space<vmem>>, vector<4x648xf32>,
    %c0_80 = arith.constant 0 : index
    %c51_81 = arith.constant 51 : index
    %80 = vector.load %arg11[%c0_80, %c51_81] : memref<4x712xf32, #tpu.memory_space<vmem>>, vector<4x648xf32>
    %c32_82 = arith.constant 32 : index
    %c0_83 = arith.constant 0 : index
    %81 = vector.load %arg10[%c32_82, %c0_83] : memref<36x648xf32, #tpu.memory_space<vmem>>, vector<4x648xf32>
    tpu.vector_store %arg10[%c32_82, %c0_83], %80 {strides = array<i32>} : memref<36x648xf32, #tpu.memory_space<vmem>>, vector<4x648xf32>,
    %c0_84 = arith.constant 0 : index
    %c0_85 = arith.constant 0 : index
    %82 = vector.load %arg10[%c0_84, %c0_85] : memref<36x648xf32, #tpu.memory_space<vmem>>, vector<36x648xf32>
    %83 = arith.truncf %82 : vector<36x648xf32> to vector<36x648xbf16>
    %c0_86 = arith.constant 0 : index
    %c0_87 = arith.constant 0 : index
    %84 = vector.load %arg2[%c0_86, %c0_87] : memref<4x36xbf16, #tpu.memory_space<vmem>>, vector<4x36xbf16>
    %cst_88 = arith.constant dense<0.000000e+00> : vector<4x648xf32>
    %85 = tpu.matmul %84, %83, %cst_88 {dimension_numbers = #tpu.dot_dimension_numbers<[1], [0], [0], [1], [0, 0, 1, 1], [], []>} : vector<4x36xbf16>, vector<36x648xbf16>, vector<4x648xf32> -> vector<4x648xf32>
    %86 = vector.broadcast %0 : vector<1x648xf32> to vector<4x648xf32>
    %87 = arith.mulf %85, %86 : vector<4x648xf32>
    %cst_89 = arith.constant dense<0.000000e+00> : vector<4xf32>
    %88 = vector.multi_reduction <add>, %87, %cst_89 [1] : vector<4x648xf32> to vector<4xf32>
    %89 = vector.shape_cast %88 : vector<4xf32> to vector<4x1xf32>
    %90 = arith.mulf %87, %87 : vector<4x648xf32>
    %cst_90 = arith.constant dense<0.000000e+00> : vector<4xf32>
    %91 = vector.multi_reduction <add>, %90, %cst_90 [1] : vector<4x648xf32> to vector<4xf32>
    %92 = vector.shape_cast %91 : vector<4xf32> to vector<4x1xf32>
    %cst_91 = arith.constant 0.001953125 : f32
    %93 = vector.broadcast %cst_91 : f32 to vector<4x1xf32>
    %94 = arith.mulf %89, %93 : vector<4x1xf32>
    %cst_92 = arith.constant 0.001953125 : f32
    %95 = vector.broadcast %cst_92 : f32 to vector<4x1xf32>
    %96 = arith.mulf %92, %95 : vector<4x1xf32>
    %97 = arith.mulf %94, %94 : vector<4x1xf32>
    %98 = arith.subf %96, %97 : vector<4x1xf32>
    %99 = vector.broadcast %94 : vector<4x1xf32> to vector<4x648xf32>
    %100 = arith.subf %85, %99 : vector<4x648xf32>
    %cst_93 = arith.constant 9.99999974E-6 : f32
    %101 = vector.broadcast %cst_93 : f32 to vector<4x1xf32>
    %102 = arith.addf %98, %101 : vector<4x1xf32>
    %103 = math.rsqrt %102 : vector<4x1xf32>
    %104 = vector.broadcast %103 : vector<4x1xf32> to vector<4x648xf32>
    %105 = arith.mulf %100, %104 : vector<4x648xf32>
    %c0_94 = arith.constant 0 : index
    %c0_95 = arith.constant 0 : index
    %106 = vector.load %arg5[%c0_94, %c0_95] : memref<4x1xf32, #tpu.memory_space<vmem>>, vector<4x1xf32>
    %107 = vector.broadcast %106 : vector<4x1xf32> to vector<4x648xf32>
    %108 = arith.mulf %105, %107 : vector<4x648xf32>
    %c0_96 = arith.constant 0 : index
    %c0_97 = arith.constant 0 : index
    %109 = vector.load %arg6[%c0_96, %c0_97] : memref<4x1xf32, #tpu.memory_space<vmem>>, vector<4x1xf32>
    %110 = vector.broadcast %109 : vector<4x1xf32> to vector<4x648xf32>
    %111 = arith.addf %108, %110 : vector<4x648xf32>
    %112 = arith.addf %111, %1 : vector<4x648xf32>
    %cst_98 = arith.constant 0.000000e+00 : f32
    %113 = vector.broadcast %cst_98 : f32 to vector<4x648xf32>
    %114 = arith.cmpf oge, %112, %113 : vector<4x648xf32>
    %cst_99 = arith.constant 0.00999999977 : f32
    %115 = vector.broadcast %cst_99 : f32 to vector<4x648xf32>
    %116 = arith.mulf %115, %112 : vector<4x648xf32>
    %117 = arith.select %114, %112, %116 : vector<4x648xi1>, vector<4x648xf32>
    %c0_100 = arith.constant 0 : index
    %c0_101 = arith.constant 0 : index
    %118 = vector.load %arg9[%c0_100, %c0_101] : memref<4x648xf32, #tpu.memory_space<vmem>>, vector<4x648xf32>
    tpu.vector_store %arg9[%c0_100, %c0_101], %117 {strides = array<i32>} : memref<4x648xf32, #tpu.memory_space<vmem>>, vector<4x648xf32>,
    return
  }
}

</mosaic_0001>

<llo_original>
// kernel: residual_block.1
$region0: #{residual_block.1}
  #allocation0 [shape = 'u32[]', space=smem, size = 0x4, offset = 0x4, fixed_abs, tag = 'smem constant byte address 0x4 - core index']
  #allocation1 [shape = 'u32[144,128]{1,0:T(1,128)}', space=vmem, size = 0x12000, scoped, tag = 'internal scratch']
  #allocation2 [shape = 'f32[36,648]{1,0:T(8,128)}', space=vmem, size = 0x1e000, scoped, tag = 'scratch operand']
  #allocation3 [shape = 'f32[4,712]{1,0:T(4,128)}', space=vmem, size = 0x3000, scoped, tag = 'scratch operand']
  %s0 = inlined_call_operand.vmem [shape: f32[4,712], index: 0, kind: input, shape index: {}]
  %s1 = inlined_call_operand.vmem [shape: bf16[4,36], index: 1, kind: input, shape index: {}]
  %s2 = inlined_call_operand.vmem [shape: bf16[4,36], index: 2, kind: input, shape index: {}]
  %s3 = inlined_call_operand.vmem [shape: f32[4,1], index: 3, kind: input, shape index: {}]
  %s4 = inlined_call_operand.vmem [shape: f32[4,1], index: 4, kind: input, shape index: {}]
  %s5 = inlined_call_operand.vmem [shape: f32[4,1], index: 5, kind: input, shape index: {}]
  %s6 = inlined_call_operand.vmem [shape: f32[4,1], index: 6, kind: input, shape index: {}]
  %s7 = inlined_call_operand.vmem [shape: f32[4,648], index: 7, kind: input, shape index: {}]
  %s8 = inlined_call_operand.vmem [shape: f32[1,648], index: 8, kind: input, shape index: {}]
  %s9 = inlined_call_operand.vmem [shape: f32[4,648], index: 9, kind: output, shape index: {}]
  %s10 = sld [smem:[#allocation0]]
  $region46: #{residual_block.1} parent=0
    _
  %s12 = ssub.s32 1, %s10
  %s13 = scalar_select 0, %s12, %s10
  // Predicated region
  $region2: #{residual_block.1} parent=0 // pred_check
    _
  $region3: #{residual_block.1} parent=0 // pred_check_branch
    %15 = sbr.rel (0) target = $region5
  $region4: #{residual_block.1} parent=0 // pred_region
    _
  $region5: #{residual_block.1} parent=0 // pred_fallthru
    _
  // Predicated region
  $region6: #{residual_block.1} parent=0 // pred_check
    _
  $region7: #{residual_block.1} parent=0 // pred_check_branch
    %17 = sbr.rel (0) target = $region9
  $region8: #{residual_block.1} parent=0 // pred_region
    _
  $region9: #{residual_block.1} parent=0 // pred_fallthru
    _
  // Predicated region
  $region10: #{residual_block.1} parent=0 // pred_check
    _
  $region11: #{residual_block.1} parent=0 // pred_check_branch
    %19 = sbr.rel (0) target = $region13
  $region12: #{residual_block.1} parent=0 // pred_region
    _
  $region13: #{residual_block.1} parent=0 // pred_fallthru
    _
  // Predicated region
  $region14: #{residual_block.1} parent=0 // pred_check
    _
  $region15: #{residual_block.1} parent=0 // pred_check_branch
    %21 = sbr.rel (0) target = $region17
  $region16: #{residual_block.1} parent=0 // pred_region
    _
  $region17: #{residual_block.1} parent=0 // pred_fallthru
    _
  // Predicated region
  $region18: #{residual_block.1} parent=0 // pred_check
    _
  $region19: #{residual_block.1} parent=0 // pred_check_branch
    %23 = sbr.rel (0) target = $region21
  $region20: #{residual_block.1} parent=0 // pred_region
    _
  $region21: #{residual_block.1} parent=0 // pred_fallthru
    _
  // Predicated region
  $region22: #{residual_block.1} parent=0 // pred_check
    _
  $region23: #{residual_block.1} parent=0 // pred_check_branch
    %25 = sbr.rel (0) target = $region25
  $region24: #{residual_block.1} parent=0 // pred_region
    _
  $region25: #{residual_block.1} parent=0 // pred_fallthru
    _
  // Predicated region
  $region26: #{residual_block.1} parent=0 // pred_check
    _
  $region27: #{residual_block.1} parent=0 // pred_check_branch
    %27 = sbr.rel (0) target = $region29
  $region28: #{residual_block.1} parent=0 // pred_region
    _
  $region29: #{residual_block.1} parent=0 // pred_fallthru
    _
  // Predicated region
  $region30: #{residual_block.1} parent=0 // pred_check
    _
  $region31: #{residual_block.1} parent=0 // pred_check_branch
    %29 = sbr.rel (0) target = $region33
  $region32: #{residual_block.1} parent=0 // pred_region
    _
  $region33: #{residual_block.1} parent=0 // pred_fallthru
    _
  // Predicated region
  $region34: #{residual_block.1} parent=0 // pred_check
    _
  $region35: #{residual_block.1} parent=0 // pred_check_branch
    %31 = sbr.rel (0) target = $region37
  $region36: #{residual_block.1} parent=0 // pred_region
    _
  $region37: #{residual_block.1} parent=0 // pred_fallthru
    _
  %v33 = vld [vmem:[%s8] sm:$0x3f]
  %v34 = vld [vmem:[%s0] sm:$0xff]
  %v35 = vld [vmem:[%s0 + $0x8] sm:$0xff]
  %v36 = vld [vmem:[%s0 + $0x10] sm:$0xff]
  %v40 = vcombine.high %v34, %v34
  %v41 = vcombine.high %v35, %v35
  %v42 = vcombine.high %v36, %v36
  %43 = vrot.lane.b32.xlu0 %v34, 115
  %v44 = vpop.permute.xlu0 %43
  %45 = vrot.lane.b32.xlu0 %v40, 115
  %v46 = vpop.permute.xlu0 %45
  %47 = vrot.lane.b32.xlu0 %v35, 115
  %v48 = vpop.permute.xlu0 %47
  %49 = vrot.lane.b32.xlu0 %v41, 115
  %v50 = vpop.permute.xlu0 %49
  %51 = vrot.lane.b32.xlu0 %v36, 115
  %v52 = vpop.permute.xlu0 %51
  %53 = vrot.lane.b32.xlu0 %v42, 115
  %v54 = vpop.permute.xlu0 %53
  %vm55 = vcmask 941056
  %v56 = vsel %vm55, %v44, %v46
  %v57 = vsel %vm55, %v46, %v48
  %v58 = vsel %vm55, %v48, %v50
  %v59 = vsel %vm55, %v50, %v52
  %v60 = vsel %vm55, %v52, %v54
  %67 = vst [vmem:[#allocation2] sm:$0xf] %v56
  %68 = vst [vmem:[#allocation2 + $0x8] sm:$0xf] %v57
  %69 = vst [vmem:[#allocation2 + $0x10] sm:$0xf] %v58
  %70 = vst [vmem:[#allocation2 + $0x18] sm:$0xf] %v59
  %71 = vst [vmem:[#allocation2 + $0x20] sm:$0xf] %v60
  %vm72 = vcmask 60416
  %73 = vst.msk [vmem:[#allocation2 + $0x28] sm:$0xf] %vm72, %v54
  %v74 = vld [vmem:[%s0] sm:$0xff]
  %v75 = vld [vmem:[%s0 + $0x8] sm:$0xff]
  %v76 = vld [vmem:[%s0 + $0x10] sm:$0xff]
  %v80 = vcombine.low %v74, %v74
  %v81 = vcombine.low %v75, %v75
  %v82 = vcombine.low %v76, %v76
  %83 = vrot.lane.b32.xlu0 %v80, 114
  %v84 = vpop.permute.xlu0 %83
  %85 = vrot.lane.b32.xlu0 %v74, 114
  %v86 = vpop.permute.xlu0 %85
  %87 = vrot.lane.b32.xlu0 %v81, 114
  %v88 = vpop.permute.xlu0 %87
  %89 = vrot.lane.b32.xlu0 %v75, 114
  %v90 = vpop.permute.xlu0 %89
  %91 = vrot.lane.b32.xlu0 %v82, 114
  %v92 = vpop.permute.xlu0 %91
  %93 = vrot.lane.b32.xlu0 %v76, 114
  %v94 = vpop.permute.xlu0 %93
  %vm95 = vcmask 932864
  %v96 = vsel %vm95, %v84, %v86
  %v97 = vsel %vm95, %v86, %v88
  %v98 = vsel %vm95, %v88, %v90
  %v99 = vsel %vm95, %v90, %v92
  %v100 = vsel %vm95, %v92, %v94
  %107 = vst [vmem:[#allocation2] sm:$0xf0] %v96
  %108 = vst [vmem:[#allocation2 + $0x8] sm:$0xf0] %v97
  %109 = vst [vmem:[#allocation2 + $0x10] sm:$0xf0] %v98
  %110 = vst [vmem:[#allocation2 + $0x18] sm:$0xf0] %v99
  %111 = vst [vmem:[#allocation2 + $0x20] sm:$0xf0] %v100
  %vm112 = vcmask 64516
  %113 = vst.msk [vmem:[#allocation2 + $0x28] sm:$0xf0] %vm112, %v94
  %v114 = vld [vmem:[%s0] sm:$0xff]
  %v115 = vld [vmem:[%s0 + $0x8] sm:$0xff]
  %v116 = vld [vmem:[%s0 + $0x10] sm:$0xff]
  %v120 = vcombine.high %v114, %v114
  %v121 = vcombine.high %v115, %v115
  %v122 = vcombine.high %v116, %v116
  %123 = vrot.lane.b32.xlu0 %v114, 113
  %v124 = vpop.permute.xlu0 %123
  %125 = vrot.lane.b32.xlu0 %v120, 113
  %v126 = vpop.permute.xlu0 %125
  %127 = vrot.lane.b32.xlu0 %v115, 113
  %v128 = vpop.permute.xlu0 %127
  %129 = vrot.lane.b32.xlu0 %v121, 113
  %v130 = vpop.permute.xlu0 %129
  %131 = vrot.lane.b32.xlu0 %v116, 113
  %v132 = vpop.permute.xlu0 %131
  %133 = vrot.lane.b32.xlu0 %v122, 113
  %v134 = vpop.permute.xlu0 %133
  %vm135 = vcmask 924672
  %v136 = vsel %vm135, %v124, %v126
  %v137 = vsel %vm135, %v126, %v128
  %v138 = vsel %vm135, %v128, %v130
  %v139 = vsel %vm135, %v130, %v132
  %v140 = vsel %vm135, %v132, %v134
  %147 = vst [vmem:[#allocation2 + $0x30] sm:$0xf] %v136
  %148 = vst [vmem:[#allocation2 + $0x38] sm:$0xf] %v137
  %149 = vst [vmem:[#allocation2 + $0x40] sm:$0xf] %v138
  %150 = vst [vmem:[#allocation2 + $0x48] sm:$0xf] %v139
  %151 = vst [vmem:[#allocation2 + $0x50] sm:$0xf] %v140
  %152 = vst.msk [vmem:[#allocation2 + $0x58] sm:$0xf] %vm72, %v134
  %v153 = vld [vmem:[%s0] sm:$0xff]
  %v154 = vld [vmem:[%s0 + $0x8] sm:$0xff]
  %v155 = vld [vmem:[%s0 + $0x10] sm:$0xff]
  %v159 = vcombine.low %v153, %v153
  %v160 = vcombine.low %v154, %v154
  %v161 = vcombine.low %v155, %v155
  %162 = vrot.lane.b32.xlu0 %v159, 97
  %v163 = vpop.permute.xlu0 %162
  %164 = vrot.lane.b32.xlu0 %v153, 97
  %v165 = vpop.permute.xlu0 %164
  %166 = vrot.lane.b32.xlu0 %v160, 97
  %v167 = vpop.permute.xlu0 %166
  %168 = vrot.lane.b32.xlu0 %v154, 97
  %v169 = vpop.permute.xlu0 %168
  %170 = vrot.lane.b32.xlu0 %v161, 97
  %v171 = vpop.permute.xlu0 %170
  %172 = vrot.lane.b32.xlu0 %v155, 97
  %v173 = vpop.permute.xlu0 %172
  %vm174 = vcmask 793600
  %v175 = vsel %vm174, %v163, %v165
  %v176 = vsel %vm174, %v165, %v167
  %v177 = vsel %vm174, %v167, %v169
  %v178 = vsel %vm174, %v169, %v171
  %v179 = vsel %vm174, %v171, %v173
  %186 = vst [vmem:[#allocation2 + $0x30] sm:$0xf0] %v175
  %187 = vst [vmem:[#allocation2 + $0x38] sm:$0xf0] %v176
  %188 = vst [vmem:[#allocation2 + $0x40] sm:$0xf0] %v177
  %189 = vst [vmem:[#allocation2 + $0x48] sm:$0xf0] %v178
  %190 = vst [vmem:[#allocation2 + $0x50] sm:$0xf0] %v179
  %191 = vst.msk [vmem:[#allocation2 + $0x58] sm:$0xf0] %vm112, %v173
  %v192 = vld [vmem:[%s0] sm:$0xff]
  %v193 = vld [vmem:[%s0 + $0x8] sm:$0xff]
  %v194 = vld [vmem:[%s0 + $0x10] sm:$0xff]
  %v198 = vcombine.high %v192, %v192
  %v199 = vcombine.high %v193, %v193
  %v200 = vcombine.high %v194, %v194
  %201 = vrot.lane.b32.xlu0 %v192, 96
  %v202 = vpop.permute.xlu0 %201
  %203 = vrot.lane.b32.xlu0 %v198, 96
  %v204 = vpop.permute.xlu0 %203
  %205 = vrot.lane.b32.xlu0 %v193, 96
  %v206 = vpop.permute.xlu0 %205
  %207 = vrot.lane.b32.xlu0 %v199, 96
  %v208 = vpop.permute.xlu0 %207
  %209 = vrot.lane.b32.xlu0 %v194, 96
  %v210 = vpop.permute.xlu0 %209
  %211 = vrot.lane.b32.xlu0 %v200, 96
  %v212 = vpop.permute.xlu0 %211
  %vm213 = vcmask 785408
  %v214 = vsel %vm213, %v202, %v204
  %v215 = vsel %vm213, %v204, %v206
  %v216 = vsel %vm213, %v206, %v208
  %v217 = vsel %vm213, %v208, %v210
  %v218 = vsel %vm213, %v210, %v212
  %225 = vst [vmem:[#allocation2 + $0x60] sm:$0xf] %v214
  %226 = vst [vmem:[#allocation2 + $0x68] sm:$0xf] %v215
  %227 = vst [vmem:[#allocation2 + $0x70] sm:$0xf] %v216
  %228 = vst [vmem:[#allocation2 + $0x78] sm:$0xf] %v217
  %229 = vst [vmem:[#allocation2 + $0x80] sm:$0xf] %v218
  %230 = vst.msk [vmem:[#allocation2 + $0x88] sm:$0xf] %vm72, %v212
  %v231 = vld [vmem:[%s0] sm:$0xff]
  %v232 = vld [vmem:[%s0 + $0x8] sm:$0xff]
  %v233 = vld [vmem:[%s0 + $0x10] sm:$0xff]
  %v237 = vcombine.low %v231, %v231
  %v238 = vcombine.low %v232, %v232
  %v239 = vcombine.low %v233, %v233
  %240 = vrot.lane.b32.xlu0 %v237, 95
  %v241 = vpop.permute.xlu0 %240
  %242 = vrot.lane.b32.xlu0 %v231, 95
  %v243 = vpop.permute.xlu0 %242
  %244 = vrot.lane.b32.xlu0 %v238, 95
  %v245 = vpop.permute.xlu0 %244
  %246 = vrot.lane.b32.xlu0 %v232, 95
  %v247 = vpop.permute.xlu0 %246
  %248 = vrot.lane.b32.xlu0 %v239, 95
  %v249 = vpop.permute.xlu0 %248
  %250 = vrot.lane.b32.xlu0 %v233, 95
  %v251 = vpop.permute.xlu0 %250
  %vm252 = vcmask 777216
  %v253 = vsel %vm252, %v241, %v243
  %v254 = vsel %vm252, %v243, %v245
  %v255 = vsel %vm252, %v245, %v247
  %v256 = vsel %vm252, %v247, %v249
  %v257 = vsel %vm252, %v249, %v251
  %264 = vst [vmem:[#allocation2 + $0x60] sm:$0xf0] %v253
  %265 = vst [vmem:[#allocation2 + $0x68] sm:$0xf0] %v254
  %266 = vst [vmem:[#allocation2 + $0x70] sm:$0xf0] %v255
  %267 = vst [vmem:[#allocation2 + $0x78] sm:$0xf0] %v256
  %268 = vst [vmem:[#allocation2 + $0x80] sm:$0xf0] %v257
  %269 = vst.msk [vmem:[#allocation2 + $0x88] sm:$0xf0] %vm112, %v251
  %v270 = vld [vmem:[%s0] sm:$0xff]
  %v271 = vld [vmem:[%s0 + $0x8] sm:$0xff]
  %v272 = vld [vmem:[%s0 + $0x10] sm:$0xff]
  %v276 = vcombine.high %v270, %v270
  %v277 = vcombine.high %v271, %v271
  %v278 = vcombine.high %v272, %v272
  %279 = vrot.lane.b32.xlu0 %v270, 79
  %v280 = vpop.permute.xlu0 %279
  %281 = vrot.lane.b32.xlu0 %v276, 79
  %v282 = vpop.permute.xlu0 %281
  %283 = vrot.lane.b32.xlu0 %v271, 79
  %v284 = vpop.permute.xlu0 %283
  %285 = vrot.lane.b32.xlu0 %v277, 79
  %v286 = vpop.permute.xlu0 %285
  %287 = vrot.lane.b32.xlu0 %v272, 79
  %v288 = vpop.permute.xlu0 %287
  %289 = vrot.lane.b32.xlu0 %v278, 79
  %v290 = vpop.permute.xlu0 %289
  %vm291 = vcmask 646144
  %v292 = vsel %vm291, %v280, %v282
  %v293 = vsel %vm291, %v282, %v284
  %v294 = vsel %vm291, %v284, %v286
  %v295 = vsel %vm291, %v286, %v288
  %v296 = vsel %vm291, %v288, %v290
  %303 = vst [vmem:[#allocation2 + $0x90] sm:$0xf] %v292
  %304 = vst [vmem:[#allocation2 + $0x98] sm:$0xf] %v293
  %305 = vst [vmem:[#allocation2 + $0xa0] sm:$0xf] %v294
  %306 = vst [vmem:[#allocation2 + $0xa8] sm:$0xf] %v295
  %307 = vst [vmem:[#allocation2 + $0xb0] sm:$0xf] %v296
  %308 = vst.msk [vmem:[#allocation2 + $0xb8] sm:$0xf] %vm72, %v290
  %v309 = vld [vmem:[%s0] sm:$0xff]
  %v310 = vld [vmem:[%s0 + $0x8] sm:$0xff]
  %v311 = vld [vmem:[%s0 + $0x10] sm:$0xff]
  %v315 = vcombine.low %v309, %v309
  %v316 = vcombine.low %v310, %v310
  %v317 = vcombine.low %v311, %v311
  %318 = vrot.lane.b32.xlu0 %v315, 78
  %v319 = vpop.permute.xlu0 %318
  %320 = vrot.lane.b32.xlu0 %v309, 78
  %v321 = vpop.permute.xlu0 %320
  %322 = vrot.lane.b32.xlu0 %v316, 78
  %v323 = vpop.permute.xlu0 %322
  %324 = vrot.lane.b32.xlu0 %v310, 78
  %v325 = vpop.permute.xlu0 %324
  %326 = vrot.lane.b32.xlu0 %v317, 78
  %v327 = vpop.permute.xlu0 %326
  %328 = vrot.lane.b32.xlu0 %v311, 78
  %v329 = vpop.permute.xlu0 %328
  %vm330 = vcmask 637952
  %v331 = vsel %vm330, %v319, %v321
  %v332 = vsel %vm330, %v321, %v323
  %v333 = vsel %vm330, %v323, %v325
  %v334 = vsel %vm330, %v325, %v327
  %v335 = vsel %vm330, %v327, %v329
  %342 = vst [vmem:[#allocation2 + $0x90] sm:$0xf0] %v331
  %343 = vst [vmem:[#allocation2 + $0x98] sm:$0xf0] %v332
  %344 = vst [vmem:[#allocation2 + $0xa0] sm:$0xf0] %v333
  %345 = vst [vmem:[#allocation2 + $0xa8] sm:$0xf0] %v334
  %346 = vst [vmem:[#allocation2 + $0xb0] sm:$0xf0] %v335
  %347 = vst.msk [vmem:[#allocation2 + $0xb8] sm:$0xf0] %vm112, %v329
  %v348 = vld [vmem:[%s0] sm:$0xff]
  %v349 = vld [vmem:[%s0 + $0x8] sm:$0xff]
  %v350 = vld [vmem:[%s0 + $0x10] sm:$0xff]
  %v354 = vcombine.high %v348, %v348
  %v355 = vcombine.high %v349, %v349
  %v356 = vcombine.high %v350, %v350
  %357 = vrot.lane.b32.xlu0 %v348, 77
  %v358 = vpop.permute.xlu0 %357
  %359 = vrot.lane.b32.xlu0 %v354, 77
  %v360 = vpop.permute.xlu0 %359
  %361 = vrot.lane.b32.xlu0 %v349, 77
  %v362 = vpop.permute.xlu0 %361
  %363 = vrot.lane.b32.xlu0 %v355, 77
  %v364 = vpop.permute.xlu0 %363
  %365 = vrot.lane.b32.xlu0 %v350, 77
  %v366 = vpop.permute.xlu0 %365
  %367 = vrot.lane.b32.xlu0 %v356, 77
  %v368 = vpop.permute.xlu0 %367
  %vm369 = vcmask 629760
  %v370 = vsel %vm369, %v358, %v360
  %v371 = vsel %vm369, %v360, %v362
  %v372 = vsel %vm369, %v362, %v364
  %v373 = vsel %vm369, %v364, %v366
  %v374 = vsel %vm369, %v366, %v368
  %381 = vst [vmem:[#allocation2 + $0xc0] sm:$0xf] %v370
  %382 = vst [vmem:[#allocation2 + $0xc8] sm:$0xf] %v371
  %383 = vst [vmem:[#allocation2 + $0xd0] sm:$0xf] %v372
  %384 = vst [vmem:[#allocation2 + $0xd8] sm:$0xf] %v373
  %385 = vst [vmem:[#allocation2 + $0xe0] sm:$0xf] %v374
  %386 = vst.msk [vmem:[#allocation2 + $0xe8] sm:$0xf] %vm72, %v368
  %v387 = vld [vmem:[#allocation2] sm:$0xff]
  %v388 = vld [vmem:[#allocation2 + $0x8] sm:$0xff]
  %v389 = vld [vmem:[#allocation2 + $0x10] sm:$0xff]
  %v390 = vld [vmem:[#allocation2 + $0x18] sm:$0xff]
  %v391 = vld [vmem:[#allocation2 + $0x20] sm:$0xff]
  %v392 = vld [vmem:[#allocation2 + $0x28] sm:$0xff]
  %v393 = vld [vmem:[#allocation2 + $0x30] sm:$0xff]
  %v394 = vld [vmem:[#allocation2 + $0x38] sm:$0xff]
  %v395 = vld [vmem:[#allocation2 + $0x40] sm:$0xff]
  %v396 = vld [vmem:[#allocation2 + $0x48] sm:$0xff]
  %v397 = vld [vmem:[#allocation2 + $0x50] sm:$0xff]
  %v398 = vld [vmem:[#allocation2 + $0x58] sm:$0xff]
  %v399 = vld [vmem:[#allocation2 + $0x60] sm:$0xff]
  %v400 = vld [vmem:[#allocation2 + $0x68] sm:$0xff]
  %v401 = vld [vmem:[#allocation2 + $0x70] sm:$0xff]
  %v402 = vld [vmem:[#allocation2 + $0x78] sm:$0xff]
  %v403 = vld [vmem:[#allocation2 + $0x80] sm:$0xff]
  %v404 = vld [vmem:[#allocation2 + $0x88] sm:$0xff]
  %v405 = vld [vmem:[#allocation2 + $0x90] sm:$0xff]
  %v406 = vld [vmem:[#allocation2 + $0x98] sm:$0xff]
  %v407 = vld [vmem:[#allocation2 + $0xa0] sm:$0xff]
  %v408 = vld [vmem:[#allocation2 + $0xa8] sm:$0xff]
  %v409 = vld [vmem:[#allocation2 + $0xb0] sm:$0xff]
  %v410 = vld [vmem:[#allocation2 + $0xb8] sm:$0xff]
  %v411 = vld [vmem:[#allocation2 + $0xc0] sm:$0xf]
  %v412 = vld [vmem:[#allocation2 + $0xc8] sm:$0xf]
  %v413 = vld [vmem:[#allocation2 + $0xd0] sm:$0xf]
  %v414 = vld [vmem:[#allocation2 + $0xd8] sm:$0xf]
  %v415 = vld [vmem:[#allocation2 + $0xe0] sm:$0xf]
  %v416 = vld [vmem:[#allocation2 + $0xe8] sm:$0xf]
  %v417 = vpack.c.bf16 %v393, %v387
  %v418 = vpack.c.bf16 %v394, %v388
  %v419 = vpack.c.bf16 %v395, %v389
  %v420 = vpack.c.bf16 %v396, %v390
  %v421 = vpack.c.bf16 %v397, %v391
  %v422 = vpack.c.bf16 %v398, %v392
  %v423 = vpack.c.bf16 %v405, %v399
  %v424 = vpack.c.bf16 %v406, %v400
  %v425 = vpack.c.bf16 %v407, %v401
  %v426 = vpack.c.bf16 %v408, %v402
  %v427 = vpack.c.bf16 %v409, %v403
  %v428 = vpack.c.bf16 %v410, %v404
  %v429 = vpack.c.bf16 %v411, %v411
  %v430 = vpack.c.bf16 %v412, %v412
  %v431 = vpack.c.bf16 %v413, %v413
  %v432 = vpack.c.bf16 %v414, %v414
  %v433 = vpack.c.bf16 %v415, %v415
  %v434 = vpack.c.bf16 %v416, %v416
  %v435 = vld [vmem:[%s1] sm:$0x3]
  %vm436 = vcmask 293888
  %v438 = vsel %vm436, %v435, 0
  %vm440 = vcmask 1041408
  %v442 = vsel %vm440, %v429, 0
  %v445 = vsel %vm440, %v430, 0
  %v448 = vsel %vm440, %v431, 0
  %v451 = vsel %vm440, %v432, 0
  %v454 = vsel %vm440, %v433, 0
  %v457 = vsel %vm440, %v434, 0
  %459 = vmatprep.subr.bf16.mxu0 %v418
  %460 = vmatpush1.bf16.msra.mxu0 %v417
  %461 = vmatprep.subr.bf16.mxu0 %v424
  %462 = vmatpush1.bf16.msra.mxu0 %v423
  %463 = vmatprep.subr.bf16.mxu0 %v445
  %464 = vmatpush1.bf16.msra.mxu0 %v442
  %465 = vmatprep.subr.bf16.mxu0 0
  %466 = vmatpush1.bf16.msra.mxu0 0
  %467 = vmatprep.subr.bf16.mxu0 0
  %468 = vmatpush1.bf16.msra.mxu0 0
  %469 = vmatprep.subr.bf16.mxu0 0
  %470 = vmatpush1.bf16.msra.mxu0 0
  %471 = vmatprep.subr.bf16.mxu0 0
  %472 = vmatpush1.bf16.msra.mxu0 0
  %473 = vmatprep.subr.bf16.mxu0 0
  %474 = vmatpush1.bf16.msra.mxu0 0
  %475 = vmatprep.subr.bf16.mxu0 0
  %476 = vmatpush1.bf16.msra.mxu0 0
  %477 = vmatprep.subr.bf16.mxu0 0
  %478 = vmatpush1.bf16.msra.mxu0 0
  %479 = vmatprep.subr.bf16.mxu0 0
  %480 = vmatpush1.bf16.msra.mxu0 0
  %481 = vmatprep.subr.bf16.mxu0 0
  %482 = vmatpush1.bf16.msra.mxu0 0
  %483 = vmatprep.subr.bf16.mxu0 0
  %484 = vmatpush1.bf16.msra.mxu0 0
  %485 = vmatprep.subr.bf16.mxu0 0
  %486 = vmatpush1.bf16.msra.mxu0 0
  %487 = vmatprep.subr.bf16.mxu0 0
  %488 = vmatpush1.bf16.msra.mxu0 0
  %489 = vmatprep.subr.bf16.mxu0 0
  %490 = vmatpush1.bf16.msra.mxu0 0
  %491 = vmatprep.mubr.bf16.mxu0 0
  %492 = vmatmul.mubr.bf16.gmra.mrb[0].mxu0 %v438
  %v493 = vpop.f32.mrb[0].mxu0
  %v494 = vadd.f32 0.0, %v493
  %v495 = vpop.f32.mrb[0].mxu0
  %v496 = vadd.f32 0.0, %v495
  %v497 = vpop.f32.mrb[0].mxu0
  %v498 = vpop.f32.mrb[0].mxu0
  %499 = vdwg.mxu0
  %500 = vmatprep.subr.bf16.mxu0 %v420
  %501 = vmatpush1.bf16.msra.mxu0 %v419
  %502 = vmatprep.subr.bf16.mxu0 %v426
  %503 = vmatpush1.bf16.msra.mxu0 %v425
  %504 = vmatprep.subr.bf16.mxu0 %v451
  %505 = vmatpush1.bf16.msra.mxu0 %v448
  %506 = vmatprep.subr.bf16.mxu0 0
  %507 = vmatpush1.bf16.msra.mxu0 0
  %508 = vmatprep.subr.bf16.mxu0 0
  %509 = vmatpush1.bf16.msra.mxu0 0
  %510 = vmatprep.subr.bf16.mxu0 0
  %511 = vmatpush1.bf16.msra.mxu0 0
  %512 = vmatprep.subr.bf16.mxu0 0
  %513 = vmatpush1.bf16.msra.mxu0 0
  %514 = vmatprep.subr.bf16.mxu0 0
  %515 = vmatpush1.bf16.msra.mxu0 0
  %516 = vmatprep.subr.bf16.mxu0 0
  %517 = vmatpush1.bf16.msra.mxu0 0
  %518 = vmatprep.subr.bf16.mxu0 0
  %519 = vmatpush1.bf16.msra.mxu0 0
  %520 = vmatprep.subr.bf16.mxu0 0
  %521 = vmatpush1.bf16.msra.mxu0 0
  %522 = vmatprep.subr.bf16.mxu0 0
  %523 = vmatpush1.bf16.msra.mxu0 0
  %524 = vmatprep.subr.bf16.mxu0 0
  %525 = vmatpush1.bf16.msra.mxu0 0
  %526 = vmatprep.subr.bf16.mxu0 0
  %527 = vmatpush1.bf16.msra.mxu0 0
  %528 = vmatprep.subr.bf16.mxu0 0
  %529 = vmatpush1.bf16.msra.mxu0 0
  %530 = vmatprep.subr.bf16.mxu0 0
  %531 = vmatpush1.bf16.msra.mxu0 0
  %532 = vmatprep.mubr.bf16.mxu0 0
  %533 = vmatmul.mubr.bf16.gmra.mrb[0].mxu0 %v438
  %v534 = vpop.f32.mrb[0].mxu0
  %v535 = vadd.f32 0.0, %v534
  %v536 = vpop.f32.mrb[0].mxu0
  %v537 = vadd.f32 0.0, %v536
  %v538 = vpop.f32.mrb[0].mxu0
  %v539 = vpop.f32.mrb[0].mxu0
  %540 = vdwg.mxu0
  %541 = vmatprep.subr.bf16.mxu0 %v422
  %542 = vmatpush1.bf16.msra.mxu0 %v421
  %543 = vmatprep.subr.bf16.mxu0 %v428
  %544 = vmatpush1.bf16.msra.mxu0 %v427
  %545 = vmatprep.subr.bf16.mxu0 %v457
  %546 = vmatpush1.bf16.msra.mxu0 %v454
  %547 = vmatprep.subr.bf16.mxu0 0
  %548 = vmatpush1.bf16.msra.mxu0 0
  %549 = vmatprep.subr.bf16.mxu0 0
  %550 = vmatpush1.bf16.msra.mxu0 0
  %551 = vmatprep.subr.bf16.mxu0 0
  %552 = vmatpush1.bf16.msra.mxu0 0
  %553 = vmatprep.subr.bf16.mxu0 0
  %554 = vmatpush1.bf16.msra.mxu0 0
  %555 = vmatprep.subr.bf16.mxu0 0
  %556 = vmatpush1.bf16.msra.mxu0 0
  %557 = vmatprep.subr.bf16.mxu0 0
  %558 = vmatpush1.bf16.msra.mxu0 0
  %559 = vmatprep.subr.bf16.mxu0 0
  %560 = vmatpush1.bf16.msra.mxu0 0
  %561 = vmatprep.subr.bf16.mxu0 0
  %562 = vmatpush1.bf16.msra.mxu0 0
  %563 = vmatprep.subr.bf16.mxu0 0
  %564 = vmatpush1.bf16.msra.mxu0 0
  %565 = vmatprep.subr.bf16.mxu0 0
  %566 = vmatpush1.bf16.msra.mxu0 0
  %567 = vmatprep.subr.bf16.mxu0 0
  %568 = vmatpush1.bf16.msra.mxu0 0
  %569 = vmatprep.subr.bf16.mxu0 0
  %570 = vmatpush1.bf16.msra.mxu0 0
  %571 = vmatprep.subr.bf16.mxu0 0
  %572 = vmatpush1.bf16.msra.mxu0 0
  %573 = vmatprep.mubr.bf16.mxu0 0
  %574 = vmatmul.mubr.bf16.gmra.mrb[0].mxu0 %v438
  %v575 = vpop.f32.mrb[0].mxu0
  %v576 = vadd.f32 0.0, %v575
  %v577 = vpop.f32.mrb[0].mxu0
  %v578 = vadd.f32 0.0, %v577
  %v579 = vpop.f32.mrb[0].mxu0
  %v580 = vpop.f32.mrb[0].mxu0
  %581 = vdwg.mxu0
  %v583 = vlaneseq
  %v584 = vshrl.u32 %v583, 7
  %v585 = vsub.s32 0, %v584
  %v586 = vrot.slane %v33, %v585
  %v587 = vlaneseq
  %v588 = vshrl.u32 %v587, 7
  %v589 = vsub.s32 1, %v588
  %v590 = vrot.slane %v33, %v589
  %v591 = vlaneseq
  %v592 = vshrl.u32 %v591, 7
  %v593 = vsub.s32 2, %v592
  %v594 = vrot.slane %v33, %v593
  %v595 = vlaneseq
  %v596 = vshrl.u32 %v595, 7
  %v597 = vsub.s32 3, %v596
  %v598 = vrot.slane %v33, %v597
  %v599 = vlaneseq
  %v600 = vshrl.u32 %v599, 7
  %v601 = vsub.s32 4, %v600
  %v602 = vrot.slane %v33, %v601
  %v603 = vlaneseq
  %v604 = vshrl.u32 %v603, 7
  %v605 = vsub.s32 5, %v604
  %v606 = vrot.slane %v33, %v605
  %v613 = vmul.f32 %v494, %v586
  %v614 = vmul.f32 %v496, %v590
  %v615 = vmul.f32 %v535, %v594
  %v616 = vmul.f32 %v537, %v598
  %v617 = vmul.f32 %v576, %v602
  %v618 = vmul.f32 %v578, %v606
  %vm619 = vcmask 1043456
  %v620 = vsel %vm619, %v613, 0.0
  %v621 = vsel %vm619, %v614, 0.0
  %v622 = vadd.f32 %v620, %v621
  %v623 = vsel %vm619, %v615, 0.0
  %v624 = vadd.f32 %v622, %v623
  %v625 = vsel %vm619, %v616, 0.0
  %v626 = vadd.f32 %v624, %v625
  %v627 = vsel %vm619, %v617, 0.0
  %v628 = vadd.f32 %v626, %v627
  %v629 = vsel %vm72, %v618, 0.0
  %v630 = vadd.f32 %v628, %v629
  %631 = vadd.xlane.f32.xlu0 %v630
  %v632 = vpop.xlane.xlu0 %631
  %v633 = vmul.f32 %v613, %v613
  %v634 = vmul.f32 %v614, %v614
  %v635 = vmul.f32 %v615, %v615
  %v636 = vmul.f32 %v616, %v616
  %v637 = vmul.f32 %v617, %v617
  %v638 = vmul.f32 %v618, %v618
  %v639 = vsel %vm619, %v633, 0.0
  %v640 = vsel %vm619, %v634, 0.0
  %v641 = vadd.f32 %v639, %v640
  %v642 = vsel %vm619, %v635, 0.0
  %v643 = vadd.f32 %v641, %v642
  %v644 = vsel %vm619, %v636, 0.0
  %v645 = vadd.f32 %v643, %v644
  %v646 = vsel %vm619, %v637, 0.0
  %v647 = vadd.f32 %v645, %v646
  %v648 = vsel %vm72, %v638, 0.0
  %v649 = vadd.f32 %v647, %v648
  %650 = vadd.xlane.f32.xlu0 %v649
  %v651 = vpop.xlane.xlu0 %650
  %v652 = vmul.f32 %v632, 0.001953125
  %v653 = vmul.f32 %v651, 0.001953125
  %v654 = vmul.f32 %v652, %v652
  %v655 = vsub.f32 %v653, %v654
  %v656 = vsub.f32 %v494, %v652
  %v657 = vsub.f32 %v496, %v652
  %v658 = vsub.f32 %v535, %v652
  %v659 = vsub.f32 %v537, %v652
  %v660 = vsub.f32 %v576, %v652
  %v661 = vsub.f32 %v578, %v652
  %v662 = vadd.f32 %v655, 1e-05
  %v663 = vrsqrt.pop %v662
  %v664 = vmul.f32 %v656, %v663
  %v665 = vmul.f32 %v657, %v663
  %v666 = vmul.f32 %v658, %v663
  %v667 = vmul.f32 %v659, %v663
  %v668 = vmul.f32 %v660, %v663
  %v669 = vmul.f32 %v661, %v663
  %v670 = vld [vmem:[%s3] sm:$0xf]
  %672 = vset.pattern.permute.xlu0 0
  %673 = vperm.xlu0 %672, %v670
  %v674 = vpop.permute.xlu0 %673
  %v676 = vmul.f32 %v664, %v674
  %v677 = vmul.f32 %v665, %v674
  %v678 = vmul.f32 %v666, %v674
  %v679 = vmul.f32 %v667, %v674
  %v680 = vmul.f32 %v668, %v674
  %v681 = vmul.f32 %v669, %v674
  %v682 = vld [vmem:[%s4] sm:$0xf]
  %684 = vset.pattern.permute.xlu0 0
  %685 = vperm.xlu0 %684, %v682
  %v686 = vpop.permute.xlu0 %685
  %v688 = vadd.f32 %v676, %v686
  %v689 = vadd.f32 %v677, %v686
  %v690 = vadd.f32 %v678, %v686
  %v691 = vadd.f32 %v679, %v686
  %v692 = vadd.f32 %v680, %v686
  %v693 = vadd.f32 %v681, %v686
  %vm694 = vcmp.ge.f32.partialorder %v688, 0.0
  %vm695 = vcmp.ge.f32.partialorder %v689, 0.0
  %vm696 = vcmp.ge.f32.partialorder %v690, 0.0
  %vm697 = vcmp.ge.f32.partialorder %v691, 0.0
  %vm698 = vcmp.ge.f32.partialorder %v692, 0.0
  %vm699 = vcmp.ge.f32.partialorder %v693, 0.0
  %v700 = vmul.f32 %v688, 0.01
  %v701 = vmul.f32 %v689, 0.01
  %v702 = vmul.f32 %v690, 0.01
  %v703 = vmul.f32 %v691, 0.01
  %v704 = vmul.f32 %v692, 0.01
  %v705 = vmul.f32 %v693, 0.01
  %v706 = vsel %vm694, %v688, %v700
  %v707 = vsel %vm695, %v689, %v701
  %v708 = vsel %vm696, %v690, %v702
  %v709 = vsel %vm697, %v691, %v703
  %v710 = vsel %vm698, %v692, %v704
  %v711 = vsel %vm699, %v693, %v705
  %v712 = vld [vmem:[%s7] sm:$0xff]
  %v713 = vld [vmem:[%s7 + $0x8] sm:$0xff]
  %v714 = vld [vmem:[%s7 + $0x10] sm:$0xff]
  %v715 = vmul.f32 %v712, 1.25
  %v716 = vmul.f32 %v713, 1.25
  %v717 = vmul.f32 %v714, 1.25
  %v721 = vcombine.high %v715, %v715
  %v722 = vcombine.high %v716, %v716
  %v723 = vcombine.high %v717, %v717
  %v727 = vmul.f32 %v706, %v715
  %v728 = vmul.f32 %v707, %v721
  %v729 = vmul.f32 %v708, %v716
  %v730 = vmul.f32 %v709, %v722
  %v731 = vmul.f32 %v710, %v717
  %v732 = vmul.f32 %v711, %v723
  %vm733 = vcmask 257024
  %734 = vst.msk [vmem:[#allocation3] sm:$0xf] %vm733, 0.0
  %vm735 = vcmask 585024
  %736 = vst.msk [vmem:[#allocation3 + $0x14] sm:$0xf] %vm735, 0.0
  %v743 = vcombine.low %v727, %v728
  %v744 = vcombine.low %v729, %v730
  %v745 = vcombine.low %v731, %v732
  %746 = vrot.lane.b32.xlu0 %v743, 32
  %v747 = vpop.permute.xlu0 %746
  %748 = vrot.lane.b32.xlu0 %v744, 32
  %v749 = vpop.permute.xlu0 %748
  %750 = vrot.lane.b32.xlu0 %v745, 32
  %v751 = vpop.permute.xlu0 %750
  %v752 = vrot.slane %v747, 4
  %v753 = vrot.slane %v749, 4
  %v754 = vrot.slane %v751, 4
  %vm755 = vcmask 261120
  %v756 = vsel %vm755, %v752, %v747
  %v757 = vsel %vm619, %v752, %v753
  %v758 = vsel %vm755, %v757, %v749
  %v759 = vsel %vm619, %v753, %v754
  %v760 = vsel %vm755, %v759, %v751
  %vm764 = vcmask 1043712
  %vm765 = vcmask 1047556
  %vm766 = vmor %vm765, %vm764
  %767 = vst.msk [vmem:[#allocation3] sm:$0xff] %vm766, %v756
  %768 = vst [vmem:[#allocation3 + $0x8] sm:$0xff] %v758
  %vm769 = vcmask 326660
  %vm770 = vmor %vm769, %vm619
  %771 = vst.msk [vmem:[#allocation3 + $0x10] sm:$0xff] %vm770, %v760
  %v772 = vld [vmem:[#allocation3] sm:$0xff]
  %v773 = vld [vmem:[#allocation3 + $0x8] sm:$0xff]
  %v774 = vld [vmem:[#allocation3 + $0x10] sm:$0xff]
  %v778 = vcombine.high %v772, %v772
  %v779 = vcombine.high %v773, %v773
  %v780 = vcombine.high %v774, %v774
  %781 = vrot.lane.b32.xlu0 %v772, 115
  %v782 = vpop.permute.xlu0 %781
  %783 = vrot.lane.b32.xlu0 %v778, 115
  %v784 = vpop.permute.xlu0 %783
  %785 = vrot.lane.b32.xlu0 %v773, 115
  %v786 = vpop.permute.xlu0 %785
  %787 = vrot.lane.b32.xlu0 %v779, 115
  %v788 = vpop.permute.xlu0 %787
  %789 = vrot.lane.b32.xlu0 %v774, 115
  %v790 = vpop.permute.xlu0 %789
  %791 = vrot.lane.b32.xlu0 %v780, 115
  %v792 = vpop.permute.xlu0 %791
  %v793 = vsel %vm55, %v782, %v784
  %v794 = vsel %vm55, %v784, %v786
  %v795 = vsel %vm55, %v786, %v788
  %v796 = vsel %vm55, %v788, %v790
  %v797 = vsel %vm55, %v790, %v792
  %804 = vst [vmem:[#allocation2] sm:$0xf] %v793
  %805 = vst [vmem:[#allocation2 + $0x8] sm:$0xf] %v794
  %806 = vst [vmem:[#allocation2 + $0x10] sm:$0xf] %v795
  %807 = vst [vmem:[#allocation2 + $0x18] sm:$0xf] %v796
  %808 = vst [vmem:[#allocation2 + $0x20] sm:$0xf] %v797
  %809 = vst.msk [vmem:[#allocation2 + $0x28] sm:$0xf] %vm72, %v792
  %v810 = vld [vmem:[#allocation3] sm:$0xff]
  %v811 = vld [vmem:[#allocation3 + $0x8] sm:$0xff]
  %v812 = vld [vmem:[#allocation3 + $0x10] sm:$0xff]
  %v816 = vcombine.low %v810, %v810
  %v817 = vcombine.low %v811, %v811
  %v818 = vcombine.low %v812, %v812
  %819 = vrot.lane.b32.xlu0 %v816, 114
  %v820 = vpop.permute.xlu0 %819
  %821 = vrot.lane.b32.xlu0 %v810, 114
  %v822 = vpop.permute.xlu0 %821
  %823 = vrot.lane.b32.xlu0 %v817, 114
  %v824 = vpop.permute.xlu0 %823
  %825 = vrot.lane.b32.xlu0 %v811, 114
  %v826 = vpop.permute.xlu0 %825
  %827 = vrot.lane.b32.xlu0 %v818, 114
  %v828 = vpop.permute.xlu0 %827
  %829 = vrot.lane.b32.xlu0 %v812, 114
  %v830 = vpop.permute.xlu0 %829
  %v831 = vsel %vm95, %v820, %v822
  %v832 = vsel %vm95, %v822, %v824
  %v833 = vsel %vm95, %v824, %v826
  %v834 = vsel %vm95, %v826, %v828
  %v835 = vsel %vm95, %v828, %v830
  %842 = vst [vmem:[#allocation2] sm:$0xf0] %v831
  %843 = vst [vmem:[#allocation2 + $0x8] sm:$0xf0] %v832
  %844 = vst [vmem:[#allocation2 + $0x10] sm:$0xf0] %v833
  %845 = vst [vmem:[#allocation2 + $0x18] sm:$0xf0] %v834
  %846 = vst [vmem:[#allocation2 + $0x20] sm:$0xf0] %v835
  %847 = vst.msk [vmem:[#allocation2 + $0x28] sm:$0xf0] %vm112, %v830
  %v848 = vld [vmem:[#allocation3] sm:$0xff]
  %v849 = vld [vmem:[#allocation3 + $0x8] sm:$0xff]
  %v850 = vld [vmem:[#allocation3 + $0x10] sm:$0xff]
  %v854 = vcombine.high %v848, %v848
  %v855 = vcombine.high %v849, %v849
  %v856 = vcombine.high %v850, %v850
  %857 = vrot.lane.b32.xlu0 %v848, 113
  %v858 = vpop.permute.xlu0 %857
  %859 = vrot.lane.b32.xlu0 %v854, 113
  %v860 = vpop.permute.xlu0 %859
  %861 = vrot.lane.b32.xlu0 %v849, 113
  %v862 = vpop.permute.xlu0 %861
  %863 = vrot.lane.b32.xlu0 %v855, 113
  %v864 = vpop.permute.xlu0 %863
  %865 = vrot.lane.b32.xlu0 %v850, 113
  %v866 = vpop.permute.xlu0 %865
  %867 = vrot.lane.b32.xlu0 %v856, 113
  %v868 = vpop.permute.xlu0 %867
  %v869 = vsel %vm135, %v858, %v860
  %v870 = vsel %vm135, %v860, %v862
  %v871 = vsel %vm135, %v862, %v864
  %v872 = vsel %vm135, %v864, %v866
  %v873 = vsel %vm135, %v866, %v868
  %880 = vst [vmem:[#allocation2 + $0x30] sm:$0xf] %v869
  %881 = vst [vmem:[#allocation2 + $0x38] sm:$0xf] %v870
  %882 = vst [vmem:[#allocation2 + $0x40] sm:$0xf] %v871
  %883 = vst [vmem:[#allocation2 + $0x48] sm:$0xf] %v872
  %884 = vst [vmem:[#allocation2 + $0x50] sm:$0xf] %v873
  %885 = vst.msk [vmem:[#allocation2 + $0x58] sm:$0xf] %vm72, %v868
  %v886 = vld [vmem:[#allocation3] sm:$0xff]
  %v887 = vld [vmem:[#allocation3 + $0x8] sm:$0xff]
  %v888 = vld [vmem:[#allocation3 + $0x10] sm:$0xff]
  %v892 = vcombine.low %v886, %v886
  %v893 = vcombine.low %v887, %v887
  %v894 = vcombine.low %v888, %v888
  %895 = vrot.lane.b32.xlu0 %v892, 97
  %v896 = vpop.permute.xlu0 %895
  %897 = vrot.lane.b32.xlu0 %v886, 97
  %v898 = vpop.permute.xlu0 %897
  %899 = vrot.lane.b32.xlu0 %v893, 97
  %v900 = vpop.permute.xlu0 %899
  %901 = vrot.lane.b32.xlu0 %v887, 97
  %v902 = vpop.permute.xlu0 %901
  %903 = vrot.lane.b32.xlu0 %v894, 97
  %v904 = vpop.permute.xlu0 %903
  %905 = vrot.lane.b32.xlu0 %v888, 97
  %v906 = vpop.permute.xlu0 %905
  %v907 = vsel %vm174, %v896, %v898
  %v908 = vsel %vm174, %v898, %v900
  %v909 = vsel %vm174, %v900, %v902
  %v910 = vsel %vm174, %v902, %v904
  %v911 = vsel %vm174, %v904, %v906
  %918 = vst [vmem:[#allocation2 + $0x30] sm:$0xf0] %v907
  %919 = vst [vmem:[#allocation2 + $0x38] sm:$0xf0] %v908
  %920 = vst [vmem:[#allocation2 + $0x40] sm:$0xf0] %v909
  %921 = vst [vmem:[#allocation2 + $0x48] sm:$0xf0] %v910
  %922 = vst [vmem:[#allocation2 + $0x50] sm:$0xf0] %v911
  %923 = vst.msk [vmem:[#allocation2 + $0x58] sm:$0xf0] %vm112, %v906
  %v924 = vld [vmem:[#allocation3] sm:$0xff]
  %v925 = vld [vmem:[#allocation3 + $0x8] sm:$0xff]
  %v926 = vld [vmem:[#allocation3 + $0x10] sm:$0xff]
  %v930 = vcombine.high %v924, %v924
  %v931 = vcombine.high %v925, %v925
  %v932 = vcombine.high %v926, %v926
  %933 = vrot.lane.b32.xlu0 %v924, 96
  %v934 = vpop.permute.xlu0 %933
  %935 = vrot.lane.b32.xlu0 %v930, 96
  %v936 = vpop.permute.xlu0 %935
  %937 = vrot.lane.b32.xlu0 %v925, 96
  %v938 = vpop.permute.xlu0 %937
  %939 = vrot.lane.b32.xlu0 %v931, 96
  %v940 = vpop.permute.xlu0 %939
  %941 = vrot.lane.b32.xlu0 %v926, 96
  %v942 = vpop.permute.xlu0 %941
  %943 = vrot.lane.b32.xlu0 %v932, 96
  %v944 = vpop.permute.xlu0 %943
  %v945 = vsel %vm213, %v934, %v936
  %v946 = vsel %vm213, %v936, %v938
  %v947 = vsel %vm213, %v938, %v940
  %v948 = vsel %vm213, %v940, %v942
  %v949 = vsel %vm213, %v942, %v944
  %956 = vst [vmem:[#allocation2 + $0x60] sm:$0xf] %v945
  %957 = vst [vmem:[#allocation2 + $0x68] sm:$0xf] %v946
  %958 = vst [vmem:[#allocation2 + $0x70] sm:$0xf] %v947
  %959 = vst [vmem:[#allocation2 + $0x78] sm:$0xf] %v948
  %960 = vst [vmem:[#allocation2 + $0x80] sm:$0xf] %v949
  %961 = vst.msk [vmem:[#allocation2 + $0x88] sm:$0xf] %vm72, %v944
  %v962 = vld [vmem:[#allocation3] sm:$0xff]
  %v963 = vld [vmem:[#allocation3 + $0x8] sm:$0xff]
  %v964 = vld [vmem:[#allocation3 + $0x10] sm:$0xff]
  %v968 = vcombine.low %v962, %v962
  %v969 = vcombine.low %v963, %v963
  %v970 = vcombine.low %v964, %v964
  %971 = vrot.lane.b32.xlu0 %v968, 95
  %v972 = vpop.permute.xlu0 %971
  %973 = vrot.lane.b32.xlu0 %v962, 95
  %v974 = vpop.permute.xlu0 %973
  %975 = vrot.lane.b32.xlu0 %v969, 95
  %v976 = vpop.permute.xlu0 %975
  %977 = vrot.lane.b32.xlu0 %v963, 95
  %v978 = vpop.permute.xlu0 %977
  %979 = vrot.lane.b32.xlu0 %v970, 95
  %v980 = vpop.permute.xlu0 %979
  %981 = vrot.lane.b32.xlu0 %v964, 95
  %v982 = vpop.permute.xlu0 %981
  %v983 = vsel %vm252, %v972, %v974
  %v984 = vsel %vm252, %v974, %v976
  %v985 = vsel %vm252, %v976, %v978
  %v986 = vsel %vm252, %v978, %v980
  %v987 = vsel %vm252, %v980, %v982
  %994 = vst [vmem:[#allocation2 + $0x60] sm:$0xf0] %v983
  %995 = vst [vmem:[#allocation2 + $0x68] sm:$0xf0] %v984
  %996 = vst [vmem:[#allocation2 + $0x70] sm:$0xf0] %v985
  %997 = vst [vmem:[#allocation2 + $0x78] sm:$0xf0] %v986
  %998 = vst [vmem:[#allocation2 + $0x80] sm:$0xf0] %v987
  %999 = vst.msk [vmem:[#allocation2 + $0x88] sm:$0xf0] %vm112, %v982
  %v1000 = vld [vmem:[#allocation3] sm:$0xff]
  %v1001 = vld [vmem:[#allocation3 + $0x8] sm:$0xff]
  %v1002 = vld [vmem:[#allocation3 + $0x10] sm:$0xff]
  %v1006 = vcombine.high %v1000, %v1000
  %v1007 = vcombine.high %v1001, %v1001
  %v1008 = vcombine.high %v1002, %v1002
  %1009 = vrot.lane.b32.xlu0 %v1000, 79
  %v1010 = vpop.permute.xlu0 %1009
  %1011 = vrot.lane.b32.xlu0 %v1006, 79
  %v1012 = vpop.permute.xlu0 %1011
  %1013 = vrot.lane.b32.xlu0 %v1001, 79
  %v1014 = vpop.permute.xlu0 %1013
  %1015 = vrot.lane.b32.xlu0 %v1007, 79
  %v1016 = vpop.permute.xlu0 %1015
  %1017 = vrot.lane.b32.xlu0 %v1002, 79
  %v1018 = vpop.permute.xlu0 %1017
  %1019 = vrot.lane.b32.xlu0 %v1008, 79
  %v1020 = vpop.permute.xlu0 %1019
  %v1021 = vsel %vm291, %v1010, %v1012
  %v1022 = vsel %vm291, %v1012, %v1014
  %v1023 = vsel %vm291, %v1014, %v1016
  %v1024 = vsel %vm291, %v1016, %v1018
  %v1025 = vsel %vm291, %v1018, %v1020
  %1032 = vst [vmem:[#allocation2 + $0x90] sm:$0xf] %v1021
  %1033 = vst [vmem:[#allocation2 + $0x98] sm:$0xf] %v1022
  %1034 = vst [vmem:[#allocation2 + $0xa0] sm:$0xf] %v1023
  %1035 = vst [vmem:[#allocation2 + $0xa8] sm:$0xf] %v1024
  %1036 = vst [vmem:[#allocation2 + $0xb0] sm:$0xf] %v1025
  %1037 = vst.msk [vmem:[#allocation2 + $0xb8] sm:$0xf] %vm72, %v1020
  %v1038 = vld [vmem:[#allocation3] sm:$0xff]
  %v1039 = vld [vmem:[#allocation3 + $0x8] sm:$0xff]
  %v1040 = vld [vmem:[#allocation3 + $0x10] sm:$0xff]
  %v1044 = vcombine.low %v1038, %v1038
  %v1045 = vcombine.low %v1039, %v1039
  %v1046 = vcombine.low %v1040, %v1040
  %1047 = vrot.lane.b32.xlu0 %v1044, 78
  %v1048 = vpop.permute.xlu0 %1047
  %1049 = vrot.lane.b32.xlu0 %v1038, 78
  %v1050 = vpop.permute.xlu0 %1049
  %1051 = vrot.lane.b32.xlu0 %v1045, 78
  %v1052 = vpop.permute.xlu0 %1051
  %1053 = vrot.lane.b32.xlu0 %v1039, 78
  %v1054 = vpop.permute.xlu0 %1053
  %1055 = vrot.lane.b32.xlu0 %v1046, 78
  %v1056 = vpop.permute.xlu0 %1055
  %1057 = vrot.lane.b32.xlu0 %v1040, 78
  %v1058 = vpop.permute.xlu0 %1057
  %v1059 = vsel %vm330, %v1048, %v1050
  %v1060 = vsel %vm330, %v1050, %v1052
  %v1061 = vsel %vm330, %v1052, %v1054
  %v1062 = vsel %vm330, %v1054, %v1056
  %v1063 = vsel %vm330, %v1056, %v1058
  %1070 = vst [vmem:[#allocation2 + $0x90] sm:$0xf0] %v1059
  %1071 = vst [vmem:[#allocation2 + $0x98] sm:$0xf0] %v1060
  %1072 = vst [vmem:[#allocation2 + $0xa0] sm:$0xf0] %v1061
  %1073 = vst [vmem:[#allocation2 + $0xa8] sm:$0xf0] %v1062
  %1074 = vst [vmem:[#allocation2 + $0xb0] sm:$0xf0] %v1063
  %1075 = vst.msk [vmem:[#allocation2 + $0xb8] sm:$0xf0] %vm112, %v1058
  %v1076 = vld [vmem:[#allocation3] sm:$0xff]
  %v1077 = vld [vmem:[#allocation3 + $0x8] sm:$0xff]
  %v1078 = vld [vmem:[#allocation3 + $0x10] sm:$0xff]
  %v1082 = vcombine.high %v1076, %v1076
  %v1083 = vcombine.high %v1077, %v1077
  %v1084 = vcombine.high %v1078, %v1078
  %1085 = vrot.lane.b32.xlu0 %v1076, 77
  %v1086 = vpop.permute.xlu0 %1085
  %1087 = vrot.lane.b32.xlu0 %v1082, 77
  %v1088 = vpop.permute.xlu0 %1087
  %1089 = vrot.lane.b32.xlu0 %v1077, 77
  %v1090 = vpop.permute.xlu0 %1089
  %1091 = vrot.lane.b32.xlu0 %v1083, 77
  %v1092 = vpop.permute.xlu0 %1091
  %1093 = vrot.lane.b32.xlu0 %v1078, 77
  %v1094 = vpop.permute.xlu0 %1093
  %1095 = vrot.lane.b32.xlu0 %v1084, 77
  %v1096 = vpop.permute.xlu0 %1095
  %v1097 = vsel %vm369, %v1086, %v1088
  %v1098 = vsel %vm369, %v1088, %v1090
  %v1099 = vsel %vm369, %v1090, %v1092
  %v1100 = vsel %vm369, %v1092, %v1094
  %v1101 = vsel %vm369, %v1094, %v1096
  %1108 = vst [vmem:[#allocation2 + $0xc0] sm:$0xf] %v1097
  %1109 = vst [vmem:[#allocation2 + $0xc8] sm:$0xf] %v1098
  %1110 = vst [vmem:[#allocation2 + $0xd0] sm:$0xf] %v1099
  %1111 = vst [vmem:[#allocation2 + $0xd8] sm:$0xf] %v1100
  %1112 = vst [vmem:[#allocation2 + $0xe0] sm:$0xf] %v1101
  %1113 = vst.msk [vmem:[#allocation2 + $0xe8] sm:$0xf] %vm72, %v1096
  %v1114 = vld [vmem:[#allocation2] sm:$0xff]
  %v1115 = vld [vmem:[#allocation2 + $0x8] sm:$0xff]
  %v1116 = vld [vmem:[#allocation2 + $0x10] sm:$0xff]
  %v1117 = vld [vmem:[#allocation2 + $0x18] sm:$0xff]
  %v1118 = vld [vmem:[#allocation2 + $0x20] sm:$0xff]
  %v1119 = vld [vmem:[#allocation2 + $0x28] sm:$0xff]
  %v1120 = vld [vmem:[#allocation2 + $0x30] sm:$0xff]
  %v1121 = vld [vmem:[#allocation2 + $0x38] sm:$0xff]
  %v1122 = vld [vmem:[#allocation2 + $0x40] sm:$0xff]
  %v1123 = vld [vmem:[#allocation2 + $0x48] sm:$0xff]
  %v1124 = vld [vmem:[#allocation2 + $0x50] sm:$0xff]
  %v1125 = vld [vmem:[#allocation2 + $0x58] sm:$0xff]
  %v1126 = vld [vmem:[#allocation2 + $0x60] sm:$0xff]
  %v1127 = vld [vmem:[#allocation2 + $0x68] sm:$0xff]
  %v1128 = vld [vmem:[#allocation2 + $0x70] sm:$0xff]
  %v1129 = vld [vmem:[#allocation2 + $0x78] sm:$0xff]
  %v1130 = vld [vmem:[#allocation2 + $0x80] sm:$0xff]
  %v1131 = vld [vmem:[#allocation2 + $0x88] sm:$0xff]
  %v1132 = vld [vmem:[#allocation2 + $0x90] sm:$0xff]
  %v1133 = vld [vmem:[#allocation2 + $0x98] sm:$0xff]
  %v1134 = vld [vmem:[#allocation2 + $0xa0] sm:$0xff]
  %v1135 = vld [vmem:[#allocation2 + $0xa8] sm:$0xff]
  %v1136 = vld [vmem:[#allocation2 + $0xb0] sm:$0xff]
  %v1137 = vld [vmem:[#allocation2 + $0xb8] sm:$0xff]
  %v1138 = vld [vmem:[#allocation2 + $0xc0] sm:$0xf]
  %v1139 = vld [vmem:[#allocation2 + $0xc8] sm:$0xf]
  %v1140 = vld [vmem:[#allocation2 + $0xd0] sm:$0xf]
  %v1141 = vld [vmem:[#allocation2 + $0xd8] sm:$0xf]
  %v1142 = vld [vmem:[#allocation2 + $0xe0] sm:$0xf]
  %v1143 = vld [vmem:[#allocation2 + $0xe8] sm:$0xf]
  %v1144 = vpack.c.bf16 %v1120, %v1114
  %v1145 = vpack.c.bf16 %v1121, %v1115
  %v1146 = vpack.c.bf16 %v1122, %v1116
  %v1147 = vpack.c.bf16 %v1123, %v1117
  %v1148 = vpack.c.bf16 %v1124, %v1118
  %v1149 = vpack.c.bf16 %v1125, %v1119
  %v1150 = vpack.c.bf16 %v1132, %v1126
  %v1151 = vpack.c.bf16 %v1133, %v1127
  %v1152 = vpack.c.bf16 %v1134, %v1128
  %v1153 = vpack.c.bf16 %v1135, %v1129
  %v1154 = vpack.c.bf16 %v1136, %v1130
  %v1155 = vpack.c.bf16 %v1137, %v1131
  %v1156 = vpack.c.bf16 %v1138, %v1138
  %v1157 = vpack.c.bf16 %v1139, %v1139
  %v1158 = vpack.c.bf16 %v1140, %v1140
  %v1159 = vpack.c.bf16 %v1141, %v1141
  %v1160 = vpack.c.bf16 %v1142, %v1142
  %v1161 = vpack.c.bf16 %v1143, %v1143
  %v1162 = vld [vmem:[%s2] sm:$0x3]
  %v1164 = vsel %vm436, %v1162, 0
  %v1167 = vsel %vm440, %v1156, 0
  %v1170 = vsel %vm440, %v1157, 0
  %v1173 = vsel %vm440, %v1158, 0
  %v1176 = vsel %vm440, %v1159, 0
  %v1179 = vsel %vm440, %v1160, 0
  %v1182 = vsel %vm440, %v1161, 0
  %1184 = vmatprep.subr.bf16.mxu0 %v1145
  %1185 = vmatpush1.bf16.msra.mxu0 %v1144
  %1186 = vmatprep.subr.bf16.mxu0 %v1151
  %1187 = vmatpush1.bf16.msra.mxu0 %v1150
  %1188 = vmatprep.subr.bf16.mxu0 %v1170
  %1189 = vmatpush1.bf16.msra.mxu0 %v1167
  %1190 = vmatprep.subr.bf16.mxu0 0
  %1191 = vmatpush1.bf16.msra.mxu0 0
  %1192 = vmatprep.subr.bf16.mxu0 0
  %1193 = vmatpush1.bf16.msra.mxu0 0
  %1194 = vmatprep.subr.bf16.mxu0 0
  %1195 = vmatpush1.bf16.msra.mxu0 0
  %1196 = vmatprep.subr.bf16.mxu0 0
  %1197 = vmatpush1.bf16.msra.mxu0 0
  %1198 = vmatprep.subr.bf16.mxu0 0
  %1199 = vmatpush1.bf16.msra.mxu0 0
  %1200 = vmatprep.subr.bf16.mxu0 0
  %1201 = vmatpush1.bf16.msra.mxu0 0
  %1202 = vmatprep.subr.bf16.mxu0 0
  %1203 = vmatpush1.bf16.msra.mxu0 0
  %1204 = vmatprep.subr.bf16.mxu0 0
  %1205 = vmatpush1.bf16.msra.mxu0 0
  %1206 = vmatprep.subr.bf16.mxu0 0
  %1207 = vmatpush1.bf16.msra.mxu0 0
  %1208 = vmatprep.subr.bf16.mxu0 0
  %1209 = vmatpush1.bf16.msra.mxu0 0
  %1210 = vmatprep.subr.bf16.mxu0 0
  %1211 = vmatpush1.bf16.msra.mxu0 0
  %1212 = vmatprep.subr.bf16.mxu0 0
  %1213 = vmatpush1.bf16.msra.mxu0 0
  %1214 = vmatprep.subr.bf16.mxu0 0
  %1215 = vmatpush1.bf16.msra.mxu0 0
  %1216 = vmatprep.mubr.bf16.mxu0 0
  %1217 = vmatmul.mubr.bf16.gmra.mrb[0].mxu0 %v1164
  %v1218 = vpop.f32.mrb[0].mxu0
  %v1219 = vadd.f32 0.0, %v1218
  %v1220 = vpop.f32.mrb[0].mxu0
  %v1221 = vadd.f32 0.0, %v1220
  %v1222 = vpop.f32.mrb[0].mxu0
  %v1223 = vpop.f32.mrb[0].mxu0
  %1224 = vdwg.mxu0
  %1225 = vmatprep.subr.bf16.mxu0 %v1147
  %1226 = vmatpush1.bf16.msra.mxu0 %v1146
  %1227 = vmatprep.subr.bf16.mxu0 %v1153
  %1228 = vmatpush1.bf16.msra.mxu0 %v1152
  %1229 = vmatprep.subr.bf16.mxu0 %v1176
  %1230 = vmatpush1.bf16.msra.mxu0 %v1173
  %1231 = vmatprep.subr.bf16.mxu0 0
  %1232 = vmatpush1.bf16.msra.mxu0 0
  %1233 = vmatprep.subr.bf16.mxu0 0
  %1234 = vmatpush1.bf16.msra.mxu0 0
  %1235 = vmatprep.subr.bf16.mxu0 0
  %1236 = vmatpush1.bf16.msra.mxu0 0
  %1237 = vmatprep.subr.bf16.mxu0 0
  %1238 = vmatpush1.bf16.msra.mxu0 0
  %1239 = vmatprep.subr.bf16.mxu0 0
  %1240 = vmatpush1.bf16.msra.mxu0 0
  %1241 = vmatprep.subr.bf16.mxu0 0
  %1242 = vmatpush1.bf16.msra.mxu0 0
  %1243 = vmatprep.subr.bf16.mxu0 0
  %1244 = vmatpush1.bf16.msra.mxu0 0
  %1245 = vmatprep.subr.bf16.mxu0 0
  %1246 = vmatpush1.bf16.msra.mxu0 0
  %1247 = vmatprep.subr.bf16.mxu0 0
  %1248 = vmatpush1.bf16.msra.mxu0 0
  %1249 = vmatprep.subr.bf16.mxu0 0
  %1250 = vmatpush1.bf16.msra.mxu0 0
  %1251 = vmatprep.subr.bf16.mxu0 0
  %1252 = vmatpush1.bf16.msra.mxu0 0
  %1253 = vmatprep.subr.bf16.mxu0 0
  %1254 = vmatpush1.bf16.msra.mxu0 0
  %1255 = vmatprep.subr.bf16.mxu0 0
  %1256 = vmatpush1.bf16.msra.mxu0 0
  %1257 = vmatprep.mubr.bf16.mxu0 0
  %1258 = vmatmul.mubr.bf16.gmra.mrb[0].mxu0 %v1164
  %v1259 = vpop.f32.mrb[0].mxu0
  %v1260 = vadd.f32 0.0, %v1259
  %v1261 = vpop.f32.mrb[0].mxu0
  %v1262 = vadd.f32 0.0, %v1261
  %v1263 = vpop.f32.mrb[0].mxu0
  %v1264 = vpop.f32.mrb[0].mxu0
  %1265 = vdwg.mxu0
  %1266 = vmatprep.subr.bf16.mxu0 %v1149
  %1267 = vmatpush1.bf16.msra.mxu0 %v1148
  %1268 = vmatprep.subr.bf16.mxu0 %v1155
  %1269 = vmatpush1.bf16.msra.mxu0 %v1154
  %1270 = vmatprep.subr.bf16.mxu0 %v1182
  %1271 = vmatpush1.bf16.msra.mxu0 %v1179
  %1272 = vmatprep.subr.bf16.mxu0 0
  %1273 = vmatpush1.bf16.msra.mxu0 0
  %1274 = vmatprep.subr.bf16.mxu0 0
  %1275 = vmatpush1.bf16.msra.mxu0 0
  %1276 = vmatprep.subr.bf16.mxu0 0
  %1277 = vmatpush1.bf16.msra.mxu0 0
  %1278 = vmatprep.subr.bf16.mxu0 0
  %1279 = vmatpush1.bf16.msra.mxu0 0
  %1280 = vmatprep.subr.bf16.mxu0 0
  %1281 = vmatpush1.bf16.msra.mxu0 0
  %1282 = vmatprep.subr.bf16.mxu0 0
  %1283 = vmatpush1.bf16.msra.mxu0 0
  %1284 = vmatprep.subr.bf16.mxu0 0
  %1285 = vmatpush1.bf16.msra.mxu0 0
  %1286 = vmatprep.subr.bf16.mxu0 0
  %1287 = vmatpush1.bf16.msra.mxu0 0
  %1288 = vmatprep.subr.bf16.mxu0 0
  %1289 = vmatpush1.bf16.msra.mxu0 0
  %1290 = vmatprep.subr.bf16.mxu0 0
  %1291 = vmatpush1.bf16.msra.mxu0 0
  %1292 = vmatprep.subr.bf16.mxu0 0
  %1293 = vmatpush1.bf16.msra.mxu0 0
  %1294 = vmatprep.subr.bf16.mxu0 0
  %1295 = vmatpush1.bf16.msra.mxu0 0
  %1296 = vmatprep.subr.bf16.mxu0 0
  %1297 = vmatpush1.bf16.msra.mxu0 0
  %1298 = vmatprep.mubr.bf16.mxu0 0
  %1299 = vmatmul.mubr.bf16.gmra.mrb[0].mxu0 %v1164
  %v1300 = vpop.f32.mrb[0].mxu0
  %v1301 = vadd.f32 0.0, %v1300
  %v1302 = vpop.f32.mrb[0].mxu0
  %v1303 = vadd.f32 0.0, %v1302
  %v1304 = vpop.f32.mrb[0].mxu0
  %v1305 = vpop.f32.mrb[0].mxu0
  %1306 = vdwg.mxu0
  %v1307 = vmul.f32 %v1219, %v586
  %v1308 = vmul.f32 %v1221, %v590
  %v1309 = vmul.f32 %v1260, %v594
  %v1310 = vmul.f32 %v1262, %v598
  %v1311 = vmul.f32 %v1301, %v602
  %v1312 = vmul.f32 %v1303, %v606
  %v1313 = vsel %vm619, %v1307, 0.0
  %v1314 = vsel %vm619, %v1308, 0.0
  %v1315 = vadd.f32 %v1313, %v1314
  %v1316 = vsel %vm619, %v1309, 0.0
  %v1317 = vadd.f32 %v1315, %v1316
  %v1318 = vsel %vm619, %v1310, 0.0
  %v1319 = vadd.f32 %v1317, %v1318
  %v1320 = vsel %vm619, %v1311, 0.0
  %v1321 = vadd.f32 %v1319, %v1320
  %v1322 = vsel %vm72, %v1312, 0.0
  %v1323 = vadd.f32 %v1321, %v1322
  %1324 = vadd.xlane.f32.xlu0 %v1323
  %v1325 = vpop.xlane.xlu0 %1324
  %v1326 = vmul.f32 %v1307, %v1307
  %v1327 = vmul.f32 %v1308, %v1308
  %v1328 = vmul.f32 %v1309, %v1309
  %v1329 = vmul.f32 %v1310, %v1310
  %v1330 = vmul.f32 %v1311, %v1311
  %v1331 = vmul.f32 %v1312, %v1312
  %v1332 = vsel %vm619, %v1326, 0.0
  %v1333 = vsel %vm619, %v1327, 0.0
  %v1334 = vadd.f32 %v1332, %v1333
  %v1335 = vsel %vm619, %v1328, 0.0
  %v1336 = vadd.f32 %v1334, %v1335
  %v1337 = vsel %vm619, %v1329, 0.0
  %v1338 = vadd.f32 %v1336, %v1337
  %v1339 = vsel %vm619, %v1330, 0.0
  %v1340 = vadd.f32 %v1338, %v1339
  %v1341 = vsel %vm72, %v1331, 0.0
  %v1342 = vadd.f32 %v1340, %v1341
  %1343 = vadd.xlane.f32.xlu0 %v1342
  %v1344 = vpop.xlane.xlu0 %1343
  %v1345 = vmul.f32 %v1325, 0.001953125
  %v1346 = vmul.f32 %v1344, 0.001953125
  %v1347 = vmul.f32 %v1345, %v1345
  %v1348 = vsub.f32 %v1346, %v1347
  %v1349 = vsub.f32 %v1219, %v1345
  %v1350 = vsub.f32 %v1221, %v1345
  %v1351 = vsub.f32 %v1260, %v1345
  %v1352 = vsub.f32 %v1262, %v1345
  %v1353 = vsub.f32 %v1301, %v1345
  %v1354 = vsub.f32 %v1303, %v1345
  %v1355 = vadd.f32 %v1348, 1e-05
  %v1356 = vrsqrt.pop %v1355
  %v1357 = vmul.f32 %v1349, %v1356
  %v1358 = vmul.f32 %v1350, %v1356
  %v1359 = vmul.f32 %v1351, %v1356
  %v1360 = vmul.f32 %v1352, %v1356
  %v1361 = vmul.f32 %v1353, %v1356
  %v1362 = vmul.f32 %v1354, %v1356
  %v1363 = vld [vmem:[%s5] sm:$0xf]
  %1365 = vset.pattern.permute.xlu0 0
  %1366 = vperm.xlu0 %1365, %v1363
  %v1367 = vpop.permute.xlu0 %1366
  %v1369 = vmul.f32 %v1357, %v1367
  %v1370 = vmul.f32 %v1358, %v1367
  %v1371 = vmul.f32 %v1359, %v1367
  %v1372 = vmul.f32 %v1360, %v1367
  %v1373 = vmul.f32 %v1361, %v1367
  %v1374 = vmul.f32 %v1362, %v1367
  %v1375 = vld [vmem:[%s6] sm:$0xf]
  %1377 = vset.pattern.permute.xlu0 0
  %1378 = vperm.xlu0 %1377, %v1375
  %v1379 = vpop.permute.xlu0 %1378
  %v1381 = vadd.f32 %v1369, %v1379
  %v1382 = vadd.f32 %v1370, %v1379
  %v1383 = vadd.f32 %v1371, %v1379
  %v1384 = vadd.f32 %v1372, %v1379
  %v1385 = vadd.f32 %v1373, %v1379
  %v1386 = vadd.f32 %v1374, %v1379
  %1387 = vrot.lane.b32.xlu0 %v34, 96
  %v1388 = vpop.permute.xlu0 %1387
  %1389 = vrot.lane.b32.xlu0 %v40, 96
  %v1390 = vpop.permute.xlu0 %1389
  %1391 = vrot.lane.b32.xlu0 %v35, 96
  %v1392 = vpop.permute.xlu0 %1391
  %1393 = vrot.lane.b32.xlu0 %v41, 96
  %v1394 = vpop.permute.xlu0 %1393
  %1395 = vrot.lane.b32.xlu0 %v36, 96
  %v1396 = vpop.permute.xlu0 %1395
  %1397 = vrot.lane.b32.xlu0 %v42, 96
  %v1398 = vpop.permute.xlu0 %1397
  %v1399 = vsel %vm213, %v1388, %v1390
  %v1400 = vsel %vm213, %v1390, %v1392
  %v1401 = vsel %vm213, %v1392, %v1394
  %v1402 = vsel %vm213, %v1394, %v1396
  %v1403 = vsel %vm213, %v1396, %v1398
  %v1410 = vadd.f32 %v1381, %v1399
  %v1411 = vadd.f32 %v1382, %v1400
  %v1412 = vadd.f32 %v1383, %v1401
  %v1413 = vadd.f32 %v1384, %v1402
  %v1414 = vadd.f32 %v1385, %v1403
  %v1415 = vadd.f32 %v1386, %v1398
  %vm1416 = vcmp.ge.f32.partialorder %v1410, 0.0
  %vm1417 = vcmp.ge.f32.partialorder %v1411, 0.0
  %vm1418 = vcmp.ge.f32.partialorder %v1412, 0.0
  %vm1419 = vcmp.ge.f32.partialorder %v1413, 0.0
  %vm1420 = vcmp.ge.f32.partialorder %v1414, 0.0
  %vm1421 = vcmp.ge.f32.partialorder %v1415, 0.0
  %v1422 = vmul.f32 %v1410, 0.01
  %v1423 = vmul.f32 %v1411, 0.01
  %v1424 = vmul.f32 %v1412, 0.01
  %v1425 = vmul.f32 %v1413, 0.01
  %v1426 = vmul.f32 %v1414, 0.01
  %v1427 = vmul.f32 %v1415, 0.01
  %v1428 = vsel %vm1416, %v1410, %v1422
  %v1429 = vsel %vm1417, %v1411, %v1423
  %v1430 = vsel %vm1418, %v1412, %v1424
  %v1431 = vsel %vm1419, %v1413, %v1425
  %v1432 = vsel %vm1420, %v1414, %v1426
  %v1433 = vsel %vm1421, %v1415, %v1427
  %v1440 = vcombine.low %v1428, %v1429
  %v1441 = vcombine.low %v1430, %v1431
  %v1442 = vcombine.low %v1432, %v1433
  %1446 = vst [vmem:[%s9] sm:$0xff] %v1440
  %1447 = vst [vmem:[%s9 + $0x8] sm:$0xff] %v1441
  %vm1448 = vmor %vm112, %vm619
  %1449 = vst.msk [vmem:[%s9 + $0x10] sm:$0xff] %vm1448, %v1442
  // Predicated region
  $region38: #{residual_block.1} parent=0 // pred_check
    _
  $region39: #{residual_block.1} parent=0 // pred_check_branch
    %1451 = sbr.rel (0) target = $region41
  $region40: #{residual_block.1} parent=0 // pred_region
    _
  $region41: #{residual_block.1} parent=0 // pred_fallthru
    _
  // Predicated region
  $region42: #{residual_block.1} parent=0 // pred_check
    _
  $region43: #{residual_block.1} parent=0 // pred_check_branch
    %1453 = sbr.rel (0) target = $region45
  $region44: #{residual_block.1} parent=0 // pred_region
    _
  $region45: #{residual_block.1} parent=0 // pred_fallthru
    _

</llo_original>
